<compile_context>
chip_gen: v6e
topology: v6e:2x2x1
jax: 0.10.0
libtpu: 0.0.40
codegen_flags: <defaults>
</compile_context>

<pallas_src>
import jax
import jax.numpy as jnp
from jax.experimental import pallas as pl
from jax.experimental.pallas import tpu as pltpu

HIDDEN = 512   # fixed by the module definition (fc1: dim -> 512)


def _round_up(x, m):
    return ((x + m - 1) // m) * m


def _cdiv(a, b):
    return -(-a // b)


def _vmem_capacity_bytes():
    try:
        return int(pltpu.get_tpu_info().vmem_capacity_bytes)
    except Exception:
        return 64 * 1024 * 1024   # conservative: v7x has 64 MiB per TensorCore


def _encoder_mlp_kernel(x_ref, w1_ref, b1_ref, w2_ref, b2_ref, o_ref):
    # x arrives as f32; cast to bf16 on the VPU right after load (MXU inputs
    # bf16, accumulation f32).
    x_bf = x_ref[...].astype(jnp.bfloat16)
    # h1 = relu(x @ W1 + b1)
    h1 = jnp.dot(x_bf, w1_ref[...], preferred_element_type=jnp.float32)
    h1 = jnp.maximum(h1 + b1_ref[...], 0.0)
    # z = relu(h1 @ W2 + b2)
    z = jnp.dot(h1.astype(jnp.bfloat16), w2_ref[...],
                preferred_element_type=jnp.float32)
    z = jnp.maximum(z + b2_ref[...], 0.0)
    o_ref[...] = z.astype(o_ref.dtype)


def encoder_mlp_forward(x, w1, b1, w2, b2, *, dim, zdim, tm_target=256):
    """x: arbitrary leading dims, flattened to (-1, dim) like torch .view."""
    x2d = x.reshape(-1, dim).astype(jnp.float32)      # glue: the .view(-1, dim)
    n = x2d.shape[0]

    # Defensive bias shapes (torch passes 1-D biases); f32 biases.
    b1_f = jnp.asarray(b1, jnp.float32).reshape(1, HIDDEN)
    b2_f = jnp.asarray(b2, jnp.float32).reshape(1, zdim)
    # bf16 weights (small, grid-resident) - MXU inputs.
    w1_bf = jnp.asarray(w1).astype(jnp.bfloat16)
    w2_bf = jnp.asarray(w2).astype(jnp.bfloat16)

    # Row tile: minimize padding instead of rounding n up to a multiple of a
    # fixed tm.  steps = cdiv(n, tm_target); tm = round_up(cdiv(n, steps), 16).
    steps = max(1, _cdiv(n, tm_target))
    tm = _round_up(_cdiv(n, steps), 16)
    n_pad = steps * tm
    if n_pad != n:
        x2d = jnp.pad(x2d, ((0, n_pad - n), (0, 0)))
    grid = (n_pad // tm,)

    # VMEM budget (upper bound: assume all operands double-buffered), clamped
    # to ~72% of the chip's VMEM capacity (v7x: 64 MiB/TC, v5e/v6e: 128 MiB).
    est = (2 * tm * dim * 4              # x tiles (f32, double buffered)
           + 2 * tm * zdim * 4           # out tiles (f32, double buffered)
           + 2 * dim * HIDDEN * 2        # W1 (bf16)
           + 2 * HIDDEN * zdim * 2       # W2 (bf16)
           + 2 * (HIDDEN + zdim) * 4     # biases (f32)
           + tm * HIDDEN * 4             # h1 intermediate (f32)
           + tm * dim * 2)               # in-kernel bf16 cast of x
    cap_target = int(0.72 * _vmem_capacity_bytes())
    vmem_limit = int(min(max(2 * est, 32 * 1024 * 1024), cap_target))
    # TODO(synk): for very large dim (resident W1 approaching cap_target) add a
    # K grid axis with an f32 VMEM accumulator (pl.when init/finalize) instead
    # of keeping the full W1 slab resident in VMEM.

    cost = pl.CostEstimate(
        flops=2 * n_pad * (dim * HIDDEN + HIDDEN * zdim),
        transcendentals=0,
        bytes_accessed=(n_pad * dim * 4          # x (f32)
                        + dim * HIDDEN * 2       # W1 (bf16)
                        + HIDDEN * zdim * 2      # W2 (bf16)
                        + (HIDDEN + zdim) * 4    # biases (f32)
                        + n_pad * zdim * 4),     # output (f32)
    )

    def _build(single_buffer_weights):
        # Grid-invariant operands never need a second pipeline buffer.
        wkw = ({"pipeline_mode": pl.Buffered(1)}
               if single_buffer_weights else {})
        in_specs = [
            pl.BlockSpec((tm, dim), lambda i: (i, 0)),               # x rows tile
            pl.BlockSpec((dim, HIDDEN), lambda i: (0, 0), **wkw),    # W1 (resident)
            pl.BlockSpec((1, HIDDEN), lambda i: (0, 0), **wkw),      # b1
            pl.BlockSpec((HIDDEN, zdim), lambda i: (0, 0), **wkw),   # W2 (resident)
            pl.BlockSpec((1, zdim), lambda i: (0, 0), **wkw),        # b2
        ]
        return pl.pallas_call(
            _encoder_mlp_kernel,
            out_shape=jax.ShapeDtypeStruct((n_pad, zdim), jnp.float32),
            grid_spec=pltpu.PrefetchScalarGridSpec(
                num_scalar_prefetch=0,
                grid=grid,
                in_specs=in_specs,
                # Narrow output block: last dim == full array dim (legal even
                # when zdim < 128); avoids 8x inflated f32 writeback.
                out_specs=pl.BlockSpec((tm, zdim), lambda i: (i, 0)),
            ),
            compiler_params=pltpu.CompilerParams(
                dimension_semantics=("parallel",),
                vmem_limit_bytes=vmem_limit,
            ),
            cost_estimate=cost,
        )

    try:
        out = jax.block_until_ready(_build(True)(x2d, w1_bf, b1_f, w2_bf, b2_f))
    except Exception:
        # Fallback: default (double) buffering for the grid-invariant operands.
        out = _build(False)(x2d, w1_bf, b1_f, w2_bf, b2_f)

    # Slice off row padding only if any was added (often none with the cdiv tm).
    return out if n_pad == n else out[:n]


def init_params(key, dim, zdim):
    """Deterministic synthetic init mimicking nn.Linear shapes (stored transposed)."""
    k1, k2, k3, k4 = jax.random.split(key, 4)
    bound1 = 1.0 / jnp.sqrt(dim)
    bound2 = 1.0 / jnp.sqrt(HIDDEN)
    w1 = jax.random.uniform(k1, (dim, HIDDEN), jnp.float32, -bound1, bound1)
    b1 = jax.random.uniform(k2, (1, HIDDEN), jnp.float32, -bound1, bound1)
    w2 = jax.random.uniform(k3, (HIDDEN, zdim), jnp.float32, -bound2, bound2)
    b2 = jax.random.uniform(k4, (1, zdim), jnp.float32, -bound2, bound2)
    return w1, b1, w2, b2


if __name__ == "__main__":
    dim, zdim = 32, 16
    key = jax.random.PRNGKey(0)
    kx, kp = jax.random.split(key)

    # batch=2, channels=4, seq=36, feature dim=32 -> .view(-1, 32) gives 288 rows
    # (exercises the multi-step row grid; tm selection gives 2 x 144, no padding).
    x = jax.random.normal(kx, (2, 4, 36, dim), jnp.float32)
    w1, b1, w2, b2 = init_params(kp, dim, zdim)

    out = encoder_mlp_forward(x, w1, b1, w2, b2, dim=dim, zdim=zdim)
    out = jax.block_until_ready(out)
    assert out.shape == (2 * 4 * 36, zdim)

    # Reference using the same bf16-in / f32-accumulate arithmetic as the kernel.
    x2d = x.reshape(-1, dim)
    h1_ref = jnp.maximum(
        jnp.dot(x2d.astype(jnp.bfloat16), w1.astype(jnp.bfloat16),
                preferred_element_type=jnp.float32) + b1, 0.0)
    ref_bf = jnp.maximum(
        jnp.dot(h1_ref.astype(jnp.bfloat16), w2.astype(jnp.bfloat16),
                preferred_element_type=jnp.float32) + b2, 0.0)
    assert jnp.allclose(out, ref_bf, atol=5e-3, rtol=5e-3)

    # Coarse sanity check vs the full-f32 reference (bf16 matmul noise band).
    ref_f32 = jnp.maximum(jnp.maximum(x2d @ w1 + b1, 0.0) @ w2 + b2, 0.0)
    assert jnp.allclose(out, ref_f32, atol=1e-1, rtol=1e-1)

    print("KERNEL_OK")
</pallas_src>

<mosaic_0001>
module attributes {stable_mosaic.version = 11 : i64} {
  func.func @_encoder_mlp_kernel(%arg0: i32, %arg1: memref<144x32xf32, #tpu.memory_space<vmem>>, %arg2: memref<32x512xbf16, #tpu.memory_space<vmem>>, %arg3: memref<1x512xf32, #tpu.memory_space<vmem>>, %arg4: memref<512x16xbf16, #tpu.memory_space<vmem>>, %arg5: memref<1x16xf32, #tpu.memory_space<vmem>>, %arg6: memref<144x16xf32, #tpu.memory_space<vmem>>) attributes {dimension_semantics = [#tpu.dimension_semantics<parallel>], iteration_bounds = array<i64: 2>, scalar_prefetch = 0 : i64, scratch_operands = 0 : i64, tpu.core_type = #tpu.core_type<tc>, window_params = [{transform_indices = @transform_0, window_bounds = array<i64: 144, 32>}, {pipeline_mode = #tpu.pipeline_mode<synchronous>, transform_indices = @transform_1, window_bounds = array<i64: 32, 512>}, {pipeline_mode = #tpu.pipeline_mode<synchronous>, transform_indices = @transform_2, window_bounds = array<i64: 1, 512>}, {pipeline_mode = #tpu.pipeline_mode<synchronous>, transform_indices = @transform_3, window_bounds = array<i64: 512, 16>}, {pipeline_mode = #tpu.pipeline_mode<synchronous>, transform_indices = @transform_4, window_bounds = array<i64: 1, 16>}, {transform_indices = @transform_5, window_bounds = array<i64: 144, 16>}]} {
    %c0 = arith.constant 0 : index
    %c0_0 = arith.constant 0 : index
    %0 = vector.load %arg1[%c0, %c0_0] : memref<144x32xf32, #tpu.memory_space<vmem>>, vector<144x32xf32>
    %1 = arith.truncf %0 : vector<144x32xf32> to vector<144x32xbf16>
    %c0_1 = arith.constant 0 : index
    %c0_2 = arith.constant 0 : index
    %2 = vector.load %arg2[%c0_1, %c0_2] : memref<32x512xbf16, #tpu.memory_space<vmem>>, vector<32x512xbf16>
    %cst = arith.constant dense<0.000000e+00> : vector<144x512xf32>
    %3 = tpu.matmul %1, %2, %cst {dimension_numbers = #tpu.dot_dimension_numbers<[1], [0], [0], [1], [0, 0, 1, 1], [], []>} : vector<144x32xbf16>, vector<32x512xbf16>, vector<144x512xf32> -> vector<144x512xf32>
    %c0_3 = arith.constant 0 : index
    %c0_4 = arith.constant 0 : index
    %4 = vector.load %arg3[%c0_3, %c0_4] : memref<1x512xf32, #tpu.memory_space<vmem>>, vector<1x512xf32>
    %5 = vector.broadcast %4 : vector<1x512xf32> to vector<144x512xf32>
    %6 = arith.addf %3, %5 : vector<144x512xf32>
    %cst_5 = arith.constant 0.000000e+00 : f32
    %7 = vector.broadcast %cst_5 : f32 to vector<144x512xf32>
    %8 = arith.maximumf %6, %7 : vector<144x512xf32>
    %9 = arith.truncf %8 : vector<144x512xf32> to vector<144x512xbf16>
    %c0_6 = arith.constant 0 : index
    %c0_7 = arith.constant 0 : index
    %10 = vector.load %arg4[%c0_6, %c0_7] : memref<512x16xbf16, #tpu.memory_space<vmem>>, vector<512x16xbf16>
    %cst_8 = arith.constant dense<0.000000e+00> : vector<144x16xf32>
    %11 = tpu.matmul %9, %10, %cst_8 {dimension_numbers = #tpu.dot_dimension_numbers<[1], [0], [0], [1], [0, 0, 1, 1], [], []>} : vector<144x512xbf16>, vector<512x16xbf16>, vector<144x16xf32> -> vector<144x16xf32>
    %c0_9 = arith.constant 0 : index
    %c0_10 = arith.constant 0 : index
    %12 = vector.load %arg5[%c0_9, %c0_10] : memref<1x16xf32, #tpu.memory_space<vmem>>, vector<1x16xf32>
    %13 = vector.broadcast %12 : vector<1x16xf32> to vector<144x16xf32>
    %14 = arith.addf %11, %13 : vector<144x16xf32>
    %cst_11 = arith.constant 0.000000e+00 : f32
    %15 = vector.broadcast %cst_11 : f32 to vector<144x16xf32>
    %16 = arith.maximumf %14, %15 : vector<144x16xf32>
    %c0_12 = arith.constant 0 : index
    %c0_13 = arith.constant 0 : index
    %17 = vector.load %arg6[%c0_12, %c0_13] : memref<144x16xf32, #tpu.memory_space<vmem>>, vector<144x16xf32>
    tpu.vector_store %arg6[%c0_12, %c0_13], %16 {strides = array<i32>} : memref<144x16xf32, #tpu.memory_space<vmem>>, vector<144x16xf32>,
    return
  }
  func.func @transform_0(%arg0: i32) -> (i32, i32) {
    %c0_i32 = arith.constant 0 : i32
    %c0_i32_0 = arith.constant 0 : i32
    return %arg0, %c0_i32 : i32, i32
  }
  func.func @transform_1(%arg0: i32) -> (i32, i32) {
    %c0_i32 = arith.constant 0 : i32
    %c0_i32_0 = arith.constant 0 : i32
    %c0_i32_1 = arith.constant 0 : i32
    return %c0_i32, %c0_i32_0 : i32, i32
  }
  func.func @transform_2(%arg0: i32) -> (i32, i32) {
    %c0_i32 = arith.constant 0 : i32
    %c0_i32_0 = arith.constant 0 : i32
    %c0_i32_1 = arith.constant 0 : i32
    return %c0_i32, %c0_i32_0 : i32, i32
  }
  func.func @transform_3(%arg0: i32) -> (i32, i32) {
    %c0_i32 = arith.constant 0 : i32
    %c0_i32_0 = arith.constant 0 : i32
    %c0_i32_1 = arith.constant 0 : i32
    return %c0_i32, %c0_i32_0 : i32, i32
  }
  func.func @transform_4(%arg0: i32) -> (i32, i32) {
    %c0_i32 = arith.constant 0 : i32
    %c0_i32_0 = arith.constant 0 : i32
    %c0_i32_1 = arith.constant 0 : i32
    return %c0_i32, %c0_i32_0 : i32, i32
  }
  func.func @transform_5(%arg0: i32) -> (i32, i32) {
    %c0_i32 = arith.constant 0 : i32
    %c0_i32_0 = arith.constant 0 : i32
    return %arg0, %c0_i32 : i32, i32
  }
}

module attributes {stable_mosaic.version = 11 : i64} {
  func.func @_encoder_mlp_kernel(%arg0: i32, %arg1: memref<144x32xf32, #tpu.memory_space<vmem>>, %arg2: memref<32x512xbf16, #tpu.memory_space<vmem>>, %arg3: memref<1x512xf32, #tpu.memory_space<vmem>>, %arg4: memref<512x16xbf16, #tpu.memory_space<vmem>>, %arg5: memref<1x16xf32, #tpu.memory_space<vmem>>, %arg6: memref<144x16xf32, #tpu.memory_space<vmem>>) attributes {dimension_semantics = [#tpu.dimension_semantics<parallel>], iteration_bounds = array<i64: 2>, scalar_prefetch = 0 : i64, scratch_operands = 0 : i64, tpu.core_type = #tpu.core_type<tc>, window_params = [{transform_indices = @transform_0, window_bounds = array<i64: 144, 32>}, {pipeline_mode = #tpu.pipeline_mode<synchronous>, transform_indices = @transform_1, window_bounds = array<i64: 32, 512>}, {pipeline_mode = #tpu.pipeline_mode<synchronous>, transform_indices = @transform_2, window_bounds = array<i64: 1, 512>}, {pipeline_mode = #tpu.pipeline_mode<synchronous>, transform_indices = @transform_3, window_bounds = array<i64: 512, 16>}, {pipeline_mode = #tpu.pipeline_mode<synchronous>, transform_indices = @transform_4, window_bounds = array<i64: 1, 16>}, {transform_indices = @transform_5, window_bounds = array<i64: 144, 16>}]} {
    %c0 = arith.constant 0 : index
    %c0_0 = arith.constant 0 : index
    %0 = vector.load %arg1[%c0, %c0_0] : memref<144x32xf32, #tpu.memory_space<vmem>>, vector<144x32xf32>
    %1 = arith.truncf %0 : vector<144x32xf32> to vector<144x32xbf16>
    %c0_1 = arith.constant 0 : index
    %c0_2 = arith.constant 0 : index
    %2 = vector.load %arg2[%c0_1, %c0_2] : memref<32x512xbf16, #tpu.memory_space<vmem>>, vector<32x512xbf16>
    %cst = arith.constant dense<0.000000e+00> : vector<144x512xf32>
    %3 = tpu.matmul %1, %2, %cst {dimension_numbers = #tpu.dot_dimension_numbers<[1], [0], [0], [1], [0, 0, 1, 1], [], []>} : vector<144x32xbf16>, vector<32x512xbf16>, vector<144x512xf32> -> vector<144x512xf32>
    %c0_3 = arith.constant 0 : index
    %c0_4 = arith.constant 0 : index
    %4 = vector.load %arg3[%c0_3, %c0_4] : memref<1x512xf32, #tpu.memory_space<vmem>>, vector<1x512xf32>
    %5 = vector.broadcast %4 : vector<1x512xf32> to vector<144x512xf32>
    %6 = arith.addf %3, %5 : vector<144x512xf32>
    %cst_5 = arith.constant 0.000000e+00 : f32
    %7 = vector.broadcast %cst_5 : f32 to vector<144x512xf32>
    %8 = arith.maximumf %6, %7 : vector<144x512xf32>
    %9 = arith.truncf %8 : vector<144x512xf32> to vector<144x512xbf16>
    %c0_6 = arith.constant 0 : index
    %c0_7 = arith.constant 0 : index
    %10 = vector.load %arg4[%c0_6, %c0_7] : memref<512x16xbf16, #tpu.memory_space<vmem>>, vector<512x16xbf16>
    %cst_8 = arith.constant dense<0.000000e+00> : vector<144x16xf32>
    %11 = tpu.matmul %9, %10, %cst_8 {dimension_numbers = #tpu.dot_dimension_numbers<[1], [0], [0], [1], [0, 0, 1, 1], [], []>} : vector<144x512xbf16>, vector<512x16xbf16>, vector<144x16xf32> -> vector<144x16xf32>
    %c0_9 = arith.constant 0 : index
    %c0_10 = arith.constant 0 : index
    %12 = vector.load %arg5[%c0_9, %c0_10] : memref<1x16xf32, #tpu.memory_space<vmem>>, vector<1x16xf32>
    %13 = vector.broadcast %12 : vector<1x16xf32> to vector<144x16xf32>
    %14 = arith.addf %11, %13 : vector<144x16xf32>
    %cst_11 = arith.constant 0.000000e+00 : f32
    %15 = vector.broadcast %cst_11 : f32 to vector<144x16xf32>
    %16 = arith.maximumf %14, %15 : vector<144x16xf32>
    %c0_12 = arith.constant 0 : index
    %c0_13 = arith.constant 0 : index
    %17 = vector.load %arg6[%c0_12, %c0_13] : memref<144x16xf32, #tpu.memory_space<vmem>>, vector<144x16xf32>
    tpu.vector_store %arg6[%c0_12, %c0_13], %16 {strides = array<i32>} : memref<144x16xf32, #tpu.memory_space<vmem>>, vector<144x16xf32>,
    return
  }
  func.func @transform_0(%arg0: i32) -> (i32, i32) {
    %c0_i32 = arith.constant 0 : i32
    %c0_i32_0 = arith.constant 0 : i32
    return %arg0, %c0_i32 : i32, i32
  }
  func.func @transform_1(%arg0: i32) -> (i32, i32) {
    %c0_i32 = arith.constant 0 : i32
    %c0_i32_0 = arith.constant 0 : i32
    %c0_i32_1 = arith.constant 0 : i32
    return %c0_i32, %c0_i32_0 : i32, i32
  }
  func.func @transform_2(%arg0: i32) -> (i32, i32) {
    %c0_i32 = arith.constant 0 : i32
    %c0_i32_0 = arith.constant 0 : i32
    %c0_i32_1 = arith.constant 0 : i32
    return %c0_i32, %c0_i32_0 : i32, i32
  }
  func.func @transform_3(%arg0: i32) -> (i32, i32) {
    %c0_i32 = arith.constant 0 : i32
    %c0_i32_0 = arith.constant 0 : i32
    %c0_i32_1 = arith.constant 0 : i32
    return %c0_i32, %c0_i32_0 : i32, i32
  }
  func.func @transform_4(%arg0: i32) -> (i32, i32) {
    %c0_i32 = arith.constant 0 : i32
    %c0_i32_0 = arith.constant 0 : i32
    %c0_i32_1 = arith.constant 0 : i32
    return %c0_i32, %c0_i32_0 : i32, i32
  }
  func.func @transform_5(%arg0: i32) -> (i32, i32) {
    %c0_i32 = arith.constant 0 : i32
    %c0_i32_0 = arith.constant 0 : i32
    return %arg0, %c0_i32 : i32, i32
  }
}

</mosaic_0001>

<llo_original>
// kernel: tpu_custom_call.1
$region0: #{tpu_custom_call.1}
  #allocation0 [shape = 'u32[]', space=smem, size = 0x4, offset = 0x4, fixed_abs, tag = 'smem constant byte address 0x4 - core index']
  #allocation1 [shape = 'u32[144,128]{1,0:T(1,128)}', space=vmem, size = 0x12000, scoped, tag = 'internal scratch']
  %s0 = inlined_call_operand.vmem [shape: f32[288,32], index: 0, kind: input, shape index: {}]
  %s1 = inlined_call_operand.vmem [shape: bf16[32,512], index: 1, kind: input, shape index: {}]
  %s2 = inlined_call_operand.vmem [shape: f32[1,512], index: 2, kind: input, shape index: {}]
  %s3 = inlined_call_operand.vmem [shape: bf16[512,16], index: 3, kind: input, shape index: {}]
  %s4 = inlined_call_operand.vmem [shape: f32[1,16], index: 4, kind: input, shape index: {}]
  %s5 = inlined_call_operand.vmem [shape: f32[288,16], index: 5, kind: output, shape index: {}]
  %s6 = sld [smem:[#allocation0]]
  $region53: #{tpu_custom_call.1} parent=0
    _
  %s8 = ssub.s32 1, %s6
  %s9 = scalar_select 0, %s8, %s6
  loop: start=0, step=1, limit=4
  $region2: #{tpu_custom_call.1} parent=0 // loop_pre_header
    _
  $region3: #{tpu_custom_call.1} parent=0 // loop_header
    %s11 = sphi 0, %s15
    %p12 = scmp.ge.s32.totalorder %s11, 4
    %s21 = sphi 0, %s23
    %s24 = sphi 0, %s21
    %s25 = sphi 0, %s24
    %s41 = sphi 0, %s25
    %s45 = sphi 0, %s45
    %s47 = sphi 0, %s45
    %s48 = sphi 0, %s47
    %s62 = sphi 0, %s48
    %s66 = sphi 0, %s66
    %s68 = sphi 0, %s66
    %s69 = sphi 0, %s68
    %s83 = sphi 0, %s69
    %s87 = sphi 0, %s87
    %s89 = sphi 0, %s87
    %s90 = sphi 0, %s89
    %s104 = sphi 0, %s90
    %s108 = sphi 0, %s108
    %s110 = sphi 0, %s108
    %s111 = sphi 0, %s110
    %s125 = sphi 0, %s111
    %s131 = sphi 0, %s133
    %s134 = sphi 0, %s131
    %s135 = sphi 0, %s134
    %s151 = sphi 0, %s135
  $region4: #{tpu_custom_call.1} parent=0 // loop_header_branch
    %14 = sbr.rel (%p12) target = $region8
  $region5: #{tpu_custom_call.1} parent=0 // loop_body
    %s16 = ssub.s32 %s11, 1
    %s17 = ssub.s32 %s11, 2
    %s18 = sadd.s32 %s11, 1
    %s19 = ssub.s32 %s11, %s18
    %p20 = scmp.eq.s32.totalorder %s19, 0
    %s22 = sadd.s32 %s21, 1
    %s23 = scalar_select %p20, %s21, %s22
    %p26 = pneg %p20
    %p27 = scmp.eq.s32.totalorder %s11, 1
    %p28 = por %p26, %p27
    %p29 = scmp.ne.s32.totalorder %s21, %s24
    %p30 = scmp.eq.s32.totalorder %s11, 0
    %p31 = por %p29, %p30
    %p32 = scmp.ne.s32.totalorder %s21, %s24
    %p33 = scmp.eq.s32.totalorder %s16, 1
    %p34 = por %p32, %p33
    %p35 = scmp.ne.s32.totalorder %s24, %s25
    %p36 = scmp.eq.s32.totalorder %s16, 0
    %p37 = por %p35, %p36
    %p38 = scmp.ne.s32.totalorder %s24, %s25
    %p39 = scmp.eq.s32.totalorder %s17, 1
    %p40 = por %p38, %p39
    %p42 = scmp.ne.s32.totalorder %s25, %s41
    %p43 = scmp.eq.s32.totalorder %s17, 0
    %p44 = por %p42, %p43
    %s46 = sadd.s32 %s45, 1
    %p49 = scmp.eq.s32.totalorder %s11, 1
    %p50 = scmp.ne.s32.totalorder %s45, %s47
    %p51 = scmp.eq.s32.totalorder %s11, 0
    %p52 = por %p50, %p51
    %p53 = scmp.ne.s32.totalorder %s45, %s47
    %p54 = scmp.eq.s32.totalorder %s16, 1
    %p55 = por %p53, %p54
    %p56 = scmp.ne.s32.totalorder %s47, %s48
    %p57 = scmp.eq.s32.totalorder %s16, 0
    %p58 = por %p56, %p57
    %p59 = scmp.ne.s32.totalorder %s47, %s48
    %p60 = scmp.eq.s32.totalorder %s17, 1
    %p61 = por %p59, %p60
    %p63 = scmp.ne.s32.totalorder %s48, %s62
    %p64 = scmp.eq.s32.totalorder %s17, 0
    %p65 = por %p63, %p64
    %s67 = sadd.s32 %s66, 1
    %p70 = scmp.eq.s32.totalorder %s11, 1
    %p71 = scmp.ne.s32.totalorder %s66, %s68
    %p72 = scmp.eq.s32.totalorder %s11, 0
    %p73 = por %p71, %p72
    %p74 = scmp.ne.s32.totalorder %s66, %s68
    %p75 = scmp.eq.s32.totalorder %s16, 1
    %p76 = por %p74, %p75
    %p77 = scmp.ne.s32.totalorder %s68, %s69
    %p78 = scmp.eq.s32.totalorder %s16, 0
    %p79 = por %p77, %p78
    %p80 = scmp.ne.s32.totalorder %s68, %s69
    %p81 = scmp.eq.s32.totalorder %s17, 1
    %p82 = por %p80, %p81
    %p84 = scmp.ne.s32.totalorder %s69, %s83
    %p85 = scmp.eq.s32.totalorder %s17, 0
    %p86 = por %p84, %p85
    %s88 = sadd.s32 %s87, 1
    %p91 = scmp.eq.s32.totalorder %s11, 1
    %p92 = scmp.ne.s32.totalorder %s87, %s89
    %p93 = scmp.eq.s32.totalorder %s11, 0
    %p94 = por %p92, %p93
    %p95 = scmp.ne.s32.totalorder %s87, %s89
    %p96 = scmp.eq.s32.totalorder %s16, 1
    %p97 = por %p95, %p96
    %p98 = scmp.ne.s32.totalorder %s89, %s90
    %p99 = scmp.eq.s32.totalorder %s16, 0
    %p100 = por %p98, %p99
    %p101 = scmp.ne.s32.totalorder %s89, %s90
    %p102 = scmp.eq.s32.totalorder %s17, 1
    %p103 = por %p101, %p102
    %p105 = scmp.ne.s32.totalorder %s90, %s104
    %p106 = scmp.eq.s32.totalorder %s17, 0
    %p107 = por %p105, %p106
    %s109 = sadd.s32 %s108, 1
    %p112 = scmp.eq.s32.totalorder %s11, 1
    %p113 = scmp.ne.s32.totalorder %s108, %s110
    %p114 = scmp.eq.s32.totalorder %s11, 0
    %p115 = por %p113, %p114
    %p116 = scmp.ne.s32.totalorder %s108, %s110
    %p117 = scmp.eq.s32.totalorder %s16, 1
    %p118 = por %p116, %p117
    %p119 = scmp.ne.s32.totalorder %s110, %s111
    %p120 = scmp.eq.s32.totalorder %s16, 0
    %p121 = por %p119, %p120
    %p122 = scmp.ne.s32.totalorder %s110, %s111
    %p123 = scmp.eq.s32.totalorder %s17, 1
    %p124 = por %p122, %p123
    %p126 = scmp.ne.s32.totalorder %s111, %s125
    %p127 = scmp.eq.s32.totalorder %s17, 0
    %p128 = por %p126, %p127
    %s129 = ssub.s32 %s11, %s18
    %p130 = scmp.eq.s32.totalorder %s129, 0
    %s132 = sadd.s32 %s131, 1
    %s133 = scalar_select %p130, %s131, %s132
    %p136 = pneg %p130
    %p137 = scmp.eq.s32.totalorder %s11, 1
    %p138 = por %p136, %p137
    %p139 = scmp.ne.s32.totalorder %s131, %s134
    %p140 = scmp.eq.s32.totalorder %s11, 0
    %p141 = por %p139, %p140
    %p142 = scmp.ne.s32.totalorder %s131, %s134
    %p143 = scmp.eq.s32.totalorder %s16, 1
    %p144 = por %p142, %p143
    %p145 = scmp.ne.s32.totalorder %s134, %s135
    %p146 = scmp.eq.s32.totalorder %s16, 0
    %p147 = por %p145, %p146
    %p148 = scmp.ne.s32.totalorder %s134, %s135
    %p149 = scmp.eq.s32.totalorder %s17, 1
    %p150 = por %p148, %p149
    %p152 = scmp.ne.s32.totalorder %s135, %s151
    %p153 = scmp.eq.s32.totalorder %s17, 0
    %p154 = por %p152, %p153
    %p155 = scmp.le.s32.totalorder 1, %s11
    %p156 = scmp.lt.s32.totalorder %s11, 3
    %p157 = pnand %p155, %p156
    %p158 = pneg %p157
    // Predicated region
    $region9: #{tpu_custom_call.1} parent=5 // pred_check
      _
    $region10: #{tpu_custom_call.1} parent=5 // pred_check_branch
      %160 = sbr.rel (%p157) target = $region12
    $region11: #{tpu_custom_call.1} parent=5 // pred_region
      %s161 = ssub.s32 %s11, 1
      // Predicated region
      $region13: #{tpu_custom_call.1} parent=11 // pred_check
        %p162 = pneg %p58
      $region14: #{tpu_custom_call.1} parent=11 // pred_check_branch
        %164 = sbr.rel (%p162) target = $region16
      $region15: #{tpu_custom_call.1} parent=11 // pred_region
        _
      $region16: #{tpu_custom_call.1} parent=11 // pred_fallthru
        _
      // Predicated region
      $region17: #{tpu_custom_call.1} parent=11 // pred_check
        %p165 = pneg %p79
      $region18: #{tpu_custom_call.1} parent=11 // pred_check_branch
        %167 = sbr.rel (%p165) target = $region20
      $region19: #{tpu_custom_call.1} parent=11 // pred_region
        _
      $region20: #{tpu_custom_call.1} parent=11 // pred_fallthru
        _
      // Predicated region
      $region21: #{tpu_custom_call.1} parent=11 // pred_check
        %p168 = pneg %p100
      $region22: #{tpu_custom_call.1} parent=11 // pred_check_branch
        %170 = sbr.rel (%p168) target = $region24
      $region23: #{tpu_custom_call.1} parent=11 // pred_region
        _
      $region24: #{tpu_custom_call.1} parent=11 // pred_fallthru
        _
      // Predicated region
      $region25: #{tpu_custom_call.1} parent=11 // pred_check
        %p171 = pneg %p121
      $region26: #{tpu_custom_call.1} parent=11 // pred_check_branch
        %173 = sbr.rel (%p171) target = $region28
      $region27: #{tpu_custom_call.1} parent=11 // pred_region
        _
      $region28: #{tpu_custom_call.1} parent=11 // pred_fallthru
        _
    $region12: #{tpu_custom_call.1} parent=5 // pred_fallthru
      _
    %p174 = scmp.lt.s32.totalorder %s11, 2
    // Predicated region
    $region29: #{tpu_custom_call.1} parent=5 // pred_check
      %p175 = pneg %p174
    $region30: #{tpu_custom_call.1} parent=5 // pred_check_branch
      %177 = sbr.rel (%p175) target = $region32
    $region31: #{tpu_custom_call.1} parent=5 // pred_region
      // Predicated region
      $region33: #{tpu_custom_call.1} parent=31 // pred_check
        %p178 = pneg %p31
      $region34: #{tpu_custom_call.1} parent=31 // pred_check_branch
        %180 = sbr.rel (%p178) target = $region36
      $region35: #{tpu_custom_call.1} parent=31 // pred_region
        %s181 = smul.u32 18, %s11
        %p182 = scmp.lt.s32.totalorder %s181, 35
        %s183 = scalar_select %p182, %s181, 35
        %s184 = smul.addr %s183, 8
        %s185 = scalar_lea.vmem %s0, %s184
        %s186 = smul.u32 18, %s11
      $region36: #{tpu_custom_call.1} parent=31 // pred_fallthru
        _
    $region32: #{tpu_custom_call.1} parent=5 // pred_fallthru
      _
    %p187 = scmp.le.s32.totalorder 1, %s11
    %p188 = scmp.lt.s32.totalorder %s11, 3
    %p189 = pnand %p187, %p188
    %p190 = pneg %p189
    // Predicated region
    $region37: #{tpu_custom_call.1} parent=5 // pred_check
      _
    $region38: #{tpu_custom_call.1} parent=5 // pred_check_branch
      %192 = sbr.rel (%p189) target = $region40
    $region39: #{tpu_custom_call.1} parent=5 // pred_region
      %s193 = ssub.s32 %s11, 1
      %s194 = smul.u32 18, %s16
      %p195 = scmp.lt.s32.totalorder %s194, 35
      %s196 = scalar_select %p195, %s194, 35
      %s197 = smul.addr %s196, 8
      %s198 = scalar_lea.vmem %s0, %s197
      %p199 = pneg %p37
      %p200 = pneg %p34
      %p201 = pneg %p58
      %p202 = pneg %p55
      %p203 = pneg %p79
      %p204 = pneg %p76
      %p205 = pneg %p100
      %p206 = pneg %p97
      %p207 = pneg %p121
      %p208 = pneg %p118
      %p209 = pneg %p147
      %p210 = pneg %p144
      %s211 = smul.u32 18, %s16
      %p212 = scmp.lt.s32.totalorder %s211, 35
      %s213 = scalar_select %p212, %s211, 35
      %s214 = smul.addr %s213, 8
      %s215 = scalar_lea.vmem %s5, %s214
      %s216 = smul.u32 18, %s16
      %p217 = scmp.lt.s32.totalorder %s216, 35
      %s218 = scalar_select %p217, %s216, 35
      %s219 = smul.addr %s218, 8
      %s220 = scalar_lea.vmem %s0, %s219
      %s221 = smul.u32 18, %s16
      %s222 = smul.u32 18, %s16
      %p223 = scmp.lt.s32.totalorder %s222, 35
      %s224 = scalar_select %p223, %s222, 35
      %s225 = smul.addr %s224, 8
      %s226 = scalar_lea.vmem %s5, %s225
      %s227 = smul.u32 18, %s16
      %v229 = vld [vmem:[%s220] sm:$0xff]
      %v230 = vld [vmem:[%s220 + $0x8] sm:$0xff]
      %v231 = vld [vmem:[%s220 + $0x10] sm:$0xff]
      %v232 = vld [vmem:[%s220 + $0x18] sm:$0xff]
      %v233 = vld [vmem:[%s220 + $0x20] sm:$0xff]
      %v234 = vld [vmem:[%s220 + $0x28] sm:$0xff]
      %v235 = vld [vmem:[%s220 + $0x30] sm:$0xff]
      %v236 = vld [vmem:[%s220 + $0x38] sm:$0xff]
      %v237 = vld [vmem:[%s220 + $0x40] sm:$0xff]
      %v238 = vld [vmem:[%s220 + $0x48] sm:$0xff]
      %v239 = vld [vmem:[%s220 + $0x50] sm:$0xff]
      %v240 = vld [vmem:[%s220 + $0x58] sm:$0xff]
      %v241 = vld [vmem:[%s220 + $0x60] sm:$0xff]
      %v242 = vld [vmem:[%s220 + $0x68] sm:$0xff]
      %v243 = vld [vmem:[%s220 + $0x70] sm:$0xff]
      %v244 = vld [vmem:[%s220 + $0x78] sm:$0xff]
      %v245 = vld [vmem:[%s220 + $0x80] sm:$0xff]
      %v246 = vld [vmem:[%s220 + $0x88] sm:$0xff]
      %v247 = vpack.c.bf16 %v230, %v229
      %v248 = vpack.c.bf16 %v232, %v231
      %v249 = vpack.c.bf16 %v234, %v233
      %v250 = vpack.c.bf16 %v236, %v235
      %v251 = vpack.c.bf16 %v238, %v237
      %v252 = vpack.c.bf16 %v240, %v239
      %v253 = vpack.c.bf16 %v242, %v241
      %v254 = vpack.c.bf16 %v244, %v243
      %v255 = vpack.c.bf16 %v246, %v245
      %v256 = vld [vmem:[%s1] sm:$0xff]
      %v257 = vld [vmem:[%s1 + $0x8] sm:$0xff]
      %v258 = vld [vmem:[%s1 + $0x10] sm:$0xff]
      %v259 = vld [vmem:[%s1 + $0x18] sm:$0xff]
      %v260 = vld [vmem:[%s1 + $0x20] sm:$0xff]
      %v261 = vld [vmem:[%s1 + $0x28] sm:$0xff]
      %v262 = vld [vmem:[%s1 + $0x30] sm:$0xff]
      %v263 = vld [vmem:[%s1 + $0x38] sm:$0xff]
      %v264 = vld [vmem:[%s2] sm:$0xf]
      %v266 = vlaneseq
      %v267 = vshrl.u32 %v266, 7
      %v268 = vsub.s32 0, %v267
      %v269 = vrot.slane %v264, %v268
      %v270 = vlaneseq
      %v271 = vshrl.u32 %v270, 7
      %v272 = vsub.s32 1, %v271
      %v273 = vrot.slane %v264, %v272
      %v274 = vlaneseq
      %v275 = vshrl.u32 %v274, 7
      %v276 = vsub.s32 2, %v275
      %v277 = vrot.slane %v264, %v276
      %v278 = vlaneseq
      %v279 = vshrl.u32 %v278, 7
      %v280 = vsub.s32 3, %v279
      %v281 = vrot.slane %v264, %v280
      %v294 = vunpack.c.l.b16 %v256
      %v295 = vunpack.c.h.b16 %v256
      %v296 = vunpack.c.l.b16 %v257
      %v297 = vunpack.c.h.b16 %v257
      %v298 = vunpack.c.l.b16 %v258
      %v299 = vunpack.c.h.b16 %v258
      %v300 = vunpack.c.l.b16 %v259
      %v301 = vunpack.c.h.b16 %v259
      %v302 = vunpack.c.l.b16 %v260
      %v303 = vunpack.c.h.b16 %v260
      %v304 = vunpack.c.l.b16 %v261
      %v305 = vunpack.c.h.b16 %v261
      %v306 = vunpack.c.l.b16 %v262
      %v307 = vunpack.c.h.b16 %v262
      %v308 = vunpack.c.l.b16 %v263
      %v309 = vunpack.c.h.b16 %v263
      %v310 = vpack.c.b16 %v298, %v294
      %v311 = vpack.c.b16 %v299, %v295
      %v312 = vpack.c.b16 %v300, %v296
      %v313 = vpack.c.b16 %v301, %v297
      %v314 = vpack.c.b16 %v306, %v302
      %v315 = vpack.c.b16 %v307, %v303
      %v316 = vpack.c.b16 %v308, %v304
      %v317 = vpack.c.b16 %v309, %v305
      %vm326 = vcmask 261120
      %v328 = vsel %vm326, %v247, 0
      %v331 = vsel %vm326, %v248, 0
      %v334 = vsel %vm326, %v249, 0
      %v337 = vsel %vm326, %v250, 0
      %v340 = vsel %vm326, %v251, 0
      %v343 = vsel %vm326, %v252, 0
      %v346 = vsel %vm326, %v253, 0
      %v349 = vsel %vm326, %v254, 0
      %v352 = vsel %vm326, %v255, 0
      %354 = vmatprep.subr.bf16.mxu0 0
      %355 = vmatpush1.bf16.msra.mxu0 0
      %356 = vmatprep.subr.bf16.mxu0 0
      %357 = vmatpush1.bf16.msra.mxu0 0
      %358 = vmatprep.subr.bf16.mxu0 0
      %359 = vmatpush1.bf16.msra.mxu0 0
      %360 = vmatprep.subr.bf16.mxu0 0
      %361 = vmatpush1.bf16.msra.mxu0 0
      %362 = vmatprep.subr.bf16.mxu0 0
      %363 = vmatpush1.bf16.msra.mxu0 0
      %364 = vmatprep.subr.bf16.mxu0 0
      %365 = vmatpush1.bf16.msra.mxu0 0
      %366 = vmatprep.subr.bf16.mxu0 %v315
      %367 = vmatpush1.bf16.msra.mxu0 %v314
      %368 = vmatprep.subr.bf16.mxu0 %v311
      %369 = vmatpush1.bf16.msra.mxu0 %v310
      %370 = vmatprep.subr.bf16.mxu0 0
      %371 = vmatpush2.bf16.msra.mxu0 0
      %372 = vmatprep.subr.bf16.mxu0 0
      %373 = vmatpush2.bf16.msra.mxu0 0
      %374 = vmatprep.subr.bf16.mxu0 0
      %375 = vmatpush2.bf16.msra.mxu0 0
      %376 = vmatprep.subr.bf16.mxu0 0
      %377 = vmatpush2.bf16.msra.mxu0 0
      %378 = vmatprep.subr.bf16.mxu0 0
      %379 = vmatpush2.bf16.msra.mxu0 0
      %380 = vmatprep.subr.bf16.mxu0 0
      %381 = vmatpush2.bf16.msra.mxu0 0
      %382 = vmatprep.subr.bf16.mxu0 0
      %383 = vmatpush2.bf16.msra.mxu0 0
      %384 = vmatprep.subr.bf16.mxu0 0
      %385 = vmatpush2.bf16.msra.mxu0 0
      %386 = vmatprep.mubr.bf16.mxu0 0
      %387 = vmatmul.mubr.bf16.gmra.mxu0 %v328
      %v388 = vpop.f32.mrf.mxu0
      %v389 = vadd.f32 %v269, %v388
      %v390 = vpop.f32.mrf.mxu0
      %v391 = vadd.f32 %v273, %v390
      %v392 = vpop.f32.mrf.mxu0
      %v393 = vadd.f32 %v269, %v392
      %v394 = vpop.f32.mrf.mxu0
      %v395 = vadd.f32 %v273, %v394
      %396 = vmatprep.mubr.bf16.mxu0 0
      %397 = vmatmul.mubr.bf16.gmra.mxu0 %v331
      %v398 = vpop.f32.mrf.mxu0
      %v399 = vadd.f32 %v269, %v398
      %v400 = vpop.f32.mrf.mxu0
      %v401 = vadd.f32 %v273, %v400
      %v402 = vpop.f32.mrf.mxu0
      %v403 = vadd.f32 %v269, %v402
      %v404 = vpop.f32.mrf.mxu0
      %v405 = vadd.f32 %v273, %v404
      %406 = vmatprep.mubr.bf16.mxu0 0
      %407 = vmatmul.mubr.bf16.gmra.mxu0 %v334
      %v408 = vpop.f32.mrf.mxu0
      %v409 = vadd.f32 %v269, %v408
      %v410 = vpop.f32.mrf.mxu0
      %v411 = vadd.f32 %v273, %v410
      %v412 = vpop.f32.mrf.mxu0
      %v413 = vadd.f32 %v269, %v412
      %v414 = vpop.f32.mrf.mxu0
      %v415 = vadd.f32 %v273, %v414
      %416 = vmatprep.mubr.bf16.mxu0 0
      %417 = vmatmul.mubr.bf16.gmra.mxu0 %v337
      %v418 = vpop.f32.mrf.mxu0
      %v419 = vadd.f32 %v269, %v418
      %v420 = vpop.f32.mrf.mxu0
      %v421 = vadd.f32 %v273, %v420
      %v422 = vpop.f32.mrf.mxu0
      %v423 = vadd.f32 %v269, %v422
      %v424 = vpop.f32.mrf.mxu0
      %v425 = vadd.f32 %v273, %v424
      %426 = vmatprep.mubr.bf16.mxu0 0
      %427 = vmatmul.mubr.bf16.gmra.mxu0 %v340
      %v428 = vpop.f32.mrf.mxu0
      %v429 = vadd.f32 %v269, %v428
      %v430 = vpop.f32.mrf.mxu0
      %v431 = vadd.f32 %v273, %v430
      %v432 = vpop.f32.mrf.mxu0
      %v433 = vadd.f32 %v269, %v432
      %v434 = vpop.f32.mrf.mxu0
      %v435 = vadd.f32 %v273, %v434
      %436 = vmatprep.mubr.bf16.mxu0 0
      %437 = vmatmul.mubr.bf16.gmra.mxu0 %v343
      %v438 = vpop.f32.mrf.mxu0
      %v439 = vadd.f32 %v269, %v438
      %v440 = vpop.f32.mrf.mxu0
      %v441 = vadd.f32 %v273, %v440
      %v442 = vpop.f32.mrf.mxu0
      %v443 = vadd.f32 %v269, %v442
      %v444 = vpop.f32.mrf.mxu0
      %v445 = vadd.f32 %v273, %v444
      %446 = vmatprep.mubr.bf16.mxu0 0
      %447 = vmatmul.mubr.bf16.gmra.mxu0 %v346
      %v448 = vpop.f32.mrf.mxu0
      %v449 = vadd.f32 %v269, %v448
      %v450 = vpop.f32.mrf.mxu0
      %v451 = vadd.f32 %v273, %v450
      %v452 = vpop.f32.mrf.mxu0
      %v453 = vadd.f32 %v269, %v452
      %v454 = vpop.f32.mrf.mxu0
      %v455 = vadd.f32 %v273, %v454
      %456 = vmatprep.mubr.bf16.mxu0 0
      %457 = vmatmul.mubr.bf16.gmra.mxu0 %v349
      %v458 = vpop.f32.mrf.mxu0
      %v459 = vadd.f32 %v269, %v458
      %v460 = vpop.f32.mrf.mxu0
      %v461 = vadd.f32 %v273, %v460
      %v462 = vpop.f32.mrf.mxu0
      %v463 = vadd.f32 %v269, %v462
      %v464 = vpop.f32.mrf.mxu0
      %v465 = vadd.f32 %v273, %v464
      %466 = vmatprep.mubr.bf16.mxu0 0
      %467 = vmatmul.mubr.bf16.gmra.mxu0 %v352
      %v468 = vpop.f32.mrf.mxu0
      %v469 = vadd.f32 %v269, %v468
      %v470 = vpop.f32.mrf.mxu0
      %v471 = vadd.f32 %v273, %v470
      %v472 = vpop.f32.mrf.mxu0
      %v473 = vadd.f32 %v269, %v472
      %v474 = vpop.f32.mrf.mxu0
      %v475 = vadd.f32 %v273, %v474
      %476 = vdwg.mxu0
      %477 = vmatprep.subr.bf16.mxu0 0
      %478 = vmatpush1.bf16.msra.mxu0 0
      %479 = vmatprep.subr.bf16.mxu0 0
      %480 = vmatpush1.bf16.msra.mxu0 0
      %481 = vmatprep.subr.bf16.mxu0 0
      %482 = vmatpush1.bf16.msra.mxu0 0
      %483 = vmatprep.subr.bf16.mxu0 0
      %484 = vmatpush1.bf16.msra.mxu0 0
      %485 = vmatprep.subr.bf16.mxu0 0
      %486 = vmatpush1.bf16.msra.mxu0 0
      %487 = vmatprep.subr.bf16.mxu0 0
      %488 = vmatpush1.bf16.msra.mxu0 0
      %489 = vmatprep.subr.bf16.mxu0 %v317
      %490 = vmatpush1.bf16.msra.mxu0 %v316
      %491 = vmatprep.subr.bf16.mxu0 %v313
      %492 = vmatpush1.bf16.msra.mxu0 %v312
      %493 = vmatprep.subr.bf16.mxu0 0
      %494 = vmatpush2.bf16.msra.mxu0 0
      %495 = vmatprep.subr.bf16.mxu0 0
      %496 = vmatpush2.bf16.msra.mxu0 0
      %497 = vmatprep.subr.bf16.mxu0 0
      %498 = vmatpush2.bf16.msra.mxu0 0
      %499 = vmatprep.subr.bf16.mxu0 0
      %500 = vmatpush2.bf16.msra.mxu0 0
      %501 = vmatprep.subr.bf16.mxu0 0
      %502 = vmatpush2.bf16.msra.mxu0 0
      %503 = vmatprep.subr.bf16.mxu0 0
      %504 = vmatpush2.bf16.msra.mxu0 0
      %505 = vmatprep.subr.bf16.mxu0 0
      %506 = vmatpush2.bf16.msra.mxu0 0
      %507 = vmatprep.subr.bf16.mxu0 0
      %508 = vmatpush2.bf16.msra.mxu0 0
      %509 = vmatprep.mubr.bf16.mxu0 0
      %510 = vmatmul.mubr.bf16.gmra.mxu0 %v328
      %v511 = vpop.f32.mrf.mxu0
      %v512 = vadd.f32 %v277, %v511
      %v513 = vpop.f32.mrf.mxu0
      %v514 = vadd.f32 %v281, %v513
      %v515 = vpop.f32.mrf.mxu0
      %v516 = vadd.f32 %v277, %v515
      %v517 = vpop.f32.mrf.mxu0
      %v518 = vadd.f32 %v281, %v517
      %519 = vmatprep.mubr.bf16.mxu0 0
      %520 = vmatmul.mubr.bf16.gmra.mxu0 %v331
      %v521 = vpop.f32.mrf.mxu0
      %v522 = vadd.f32 %v277, %v521
      %v523 = vpop.f32.mrf.mxu0
      %v524 = vadd.f32 %v281, %v523
      %v525 = vpop.f32.mrf.mxu0
      %v526 = vadd.f32 %v277, %v525
      %v527 = vpop.f32.mrf.mxu0
      %v528 = vadd.f32 %v281, %v527
      %529 = vmatprep.mubr.bf16.mxu0 0
      %530 = vmatmul.mubr.bf16.gmra.mxu0 %v334
      %v531 = vpop.f32.mrf.mxu0
      %v532 = vadd.f32 %v277, %v531
      %v533 = vpop.f32.mrf.mxu0
      %v534 = vadd.f32 %v281, %v533
      %v535 = vpop.f32.mrf.mxu0
      %v536 = vadd.f32 %v277, %v535
      %v537 = vpop.f32.mrf.mxu0
      %v538 = vadd.f32 %v281, %v537
      %539 = vmatprep.mubr.bf16.mxu0 0
      %540 = vmatmul.mubr.bf16.gmra.mxu0 %v337
      %v541 = vpop.f32.mrf.mxu0
      %v542 = vadd.f32 %v277, %v541
      %v543 = vpop.f32.mrf.mxu0
      %v544 = vadd.f32 %v281, %v543
      %v545 = vpop.f32.mrf.mxu0
      %v546 = vadd.f32 %v277, %v545
      %v547 = vpop.f32.mrf.mxu0
      %v548 = vadd.f32 %v281, %v547
      %549 = vmatprep.mubr.bf16.mxu0 0
      %550 = vmatmul.mubr.bf16.gmra.mxu0 %v340
      %v551 = vpop.f32.mrf.mxu0
      %v552 = vadd.f32 %v277, %v551
      %v553 = vpop.f32.mrf.mxu0
      %v554 = vadd.f32 %v281, %v553
      %v555 = vpop.f32.mrf.mxu0
      %v556 = vadd.f32 %v277, %v555
      %v557 = vpop.f32.mrf.mxu0
      %v558 = vadd.f32 %v281, %v557
      %559 = vmatprep.mubr.bf16.mxu0 0
      %560 = vmatmul.mubr.bf16.gmra.mxu0 %v343
      %v561 = vpop.f32.mrf.mxu0
      %v562 = vadd.f32 %v277, %v561
      %v563 = vpop.f32.mrf.mxu0
      %v564 = vadd.f32 %v281, %v563
      %v565 = vpop.f32.mrf.mxu0
      %v566 = vadd.f32 %v277, %v565
      %v567 = vpop.f32.mrf.mxu0
      %v568 = vadd.f32 %v281, %v567
      %569 = vmatprep.mubr.bf16.mxu0 0
      %570 = vmatmul.mubr.bf16.gmra.mxu0 %v346
      %v571 = vpop.f32.mrf.mxu0
      %v572 = vadd.f32 %v277, %v571
      %v573 = vpop.f32.mrf.mxu0
      %v574 = vadd.f32 %v281, %v573
      %v575 = vpop.f32.mrf.mxu0
      %v576 = vadd.f32 %v277, %v575
      %v577 = vpop.f32.mrf.mxu0
      %v578 = vadd.f32 %v281, %v577
      %579 = vmatprep.mubr.bf16.mxu0 0
      %580 = vmatmul.mubr.bf16.gmra.mxu0 %v349
      %v581 = vpop.f32.mrf.mxu0
      %v582 = vadd.f32 %v277, %v581
      %v583 = vpop.f32.mrf.mxu0
      %v584 = vadd.f32 %v281, %v583
      %v585 = vpop.f32.mrf.mxu0
      %v586 = vadd.f32 %v277, %v585
      %v587 = vpop.f32.mrf.mxu0
      %v588 = vadd.f32 %v281, %v587
      %589 = vmatprep.mubr.bf16.mxu0 0
      %590 = vmatmul.mubr.bf16.gmra.mxu0 %v352
      %v591 = vpop.f32.mrf.mxu0
      %v592 = vadd.f32 %v277, %v591
      %v593 = vpop.f32.mrf.mxu0
      %v594 = vadd.f32 %v281, %v593
      %v595 = vpop.f32.mrf.mxu0
      %v596 = vadd.f32 %v277, %v595
      %v597 = vpop.f32.mrf.mxu0
      %v598 = vadd.f32 %v281, %v597
      %599 = vdwg.mxu0
      %v600 = vmax.f32 %v389, 0.0
      %v601 = vmax.f32 %v391, 0.0
      %v602 = vmax.f32 %v512, 0.0
      %v603 = vmax.f32 %v514, 0.0
      %v604 = vmax.f32 %v393, 0.0
      %v605 = vmax.f32 %v395, 0.0
      %v606 = vmax.f32 %v516, 0.0
      %v607 = vmax.f32 %v518, 0.0
      %v608 = vmax.f32 %v399, 0.0
      %v609 = vmax.f32 %v401, 0.0
      %v610 = vmax.f32 %v522, 0.0
      %v611 = vmax.f32 %v524, 0.0
      %v612 = vmax.f32 %v403, 0.0
      %v613 = vmax.f32 %v405, 0.0
      %v614 = vmax.f32 %v526, 0.0
      %v615 = vmax.f32 %v528, 0.0
      %v616 = vmax.f32 %v409, 0.0
      %v617 = vmax.f32 %v411, 0.0
      %v618 = vmax.f32 %v532, 0.0
      %v619 = vmax.f32 %v534, 0.0
      %v620 = vmax.f32 %v413, 0.0
      %v621 = vmax.f32 %v415, 0.0
      %v622 = vmax.f32 %v536, 0.0
      %v623 = vmax.f32 %v538, 0.0
      %v624 = vmax.f32 %v419, 0.0
      %v625 = vmax.f32 %v421, 0.0
      %v626 = vmax.f32 %v542, 0.0
      %v627 = vmax.f32 %v544, 0.0
      %v628 = vmax.f32 %v423, 0.0
      %v629 = vmax.f32 %v425, 0.0
      %v630 = vmax.f32 %v546, 0.0
      %v631 = vmax.f32 %v548, 0.0
      %v632 = vmax.f32 %v429, 0.0
      %v633 = vmax.f32 %v431, 0.0
      %v634 = vmax.f32 %v552, 0.0
      %v635 = vmax.f32 %v554, 0.0
      %v636 = vmax.f32 %v433, 0.0
      %v637 = vmax.f32 %v435, 0.0
      %v638 = vmax.f32 %v556, 0.0
      %v639 = vmax.f32 %v558, 0.0
      %v640 = vmax.f32 %v439, 0.0
      %v641 = vmax.f32 %v441, 0.0
      %v642 = vmax.f32 %v562, 0.0
      %v643 = vmax.f32 %v564, 0.0
      %v644 = vmax.f32 %v443, 0.0
      %v645 = vmax.f32 %v445, 0.0
      %v646 = vmax.f32 %v566, 0.0
      %v647 = vmax.f32 %v568, 0.0
      %v648 = vmax.f32 %v449, 0.0
      %v649 = vmax.f32 %v451, 0.0
      %v650 = vmax.f32 %v572, 0.0
      %v651 = vmax.f32 %v574, 0.0
      %v652 = vmax.f32 %v453, 0.0
      %v653 = vmax.f32 %v455, 0.0
      %v654 = vmax.f32 %v576, 0.0
      %v655 = vmax.f32 %v578, 0.0
      %v656 = vmax.f32 %v459, 0.0
      %v657 = vmax.f32 %v461, 0.0
      %v658 = vmax.f32 %v582, 0.0
      %v659 = vmax.f32 %v584, 0.0
      %v660 = vmax.f32 %v463, 0.0
      %v661 = vmax.f32 %v465, 0.0
      %v662 = vmax.f32 %v586, 0.0
      %v663 = vmax.f32 %v588, 0.0
      %v664 = vmax.f32 %v469, 0.0
      %v665 = vmax.f32 %v471, 0.0
      %v666 = vmax.f32 %v592, 0.0
      %v667 = vmax.f32 %v594, 0.0
      %v668 = vmax.f32 %v473, 0.0
      %v669 = vmax.f32 %v475, 0.0
      %v670 = vmax.f32 %v596, 0.0
      %v671 = vmax.f32 %v598, 0.0
      %v672 = vpack.c.bf16 %v604, %v600
      %v673 = vpack.c.bf16 %v605, %v601
      %v674 = vpack.c.bf16 %v606, %v602
      %v675 = vpack.c.bf16 %v607, %v603
      %v676 = vpack.c.bf16 %v612, %v608
      %v677 = vpack.c.bf16 %v613, %v609
      %v678 = vpack.c.bf16 %v614, %v610
      %v679 = vpack.c.bf16 %v615, %v611
      %v680 = vpack.c.bf16 %v620, %v616
      %v681 = vpack.c.bf16 %v621, %v617
      %v682 = vpack.c.bf16 %v622, %v618
      %v683 = vpack.c.bf16 %v623, %v619
      %v684 = vpack.c.bf16 %v628, %v624
      %v685 = vpack.c.bf16 %v629, %v625
      %v686 = vpack.c.bf16 %v630, %v626
      %v687 = vpack.c.bf16 %v631, %v627
      %v688 = vpack.c.bf16 %v636, %v632
      %v689 = vpack.c.bf16 %v637, %v633
      %v690 = vpack.c.bf16 %v638, %v634
      %v691 = vpack.c.bf16 %v639, %v635
      %v692 = vpack.c.bf16 %v644, %v640
      %v693 = vpack.c.bf16 %v645, %v641
      %v694 = vpack.c.bf16 %v646, %v642
      %v695 = vpack.c.bf16 %v647, %v643
      %v696 = vpack.c.bf16 %v652, %v648
      %v697 = vpack.c.bf16 %v653, %v649
      %v698 = vpack.c.bf16 %v654, %v650
      %v699 = vpack.c.bf16 %v655, %v651
      %v700 = vpack.c.bf16 %v660, %v656
      %v701 = vpack.c.bf16 %v661, %v657
      %v702 = vpack.c.bf16 %v662, %v658
      %v703 = vpack.c.bf16 %v663, %v659
      %v704 = vpack.c.bf16 %v668, %v664
      %v705 = vpack.c.bf16 %v669, %v665
      %v706 = vpack.c.bf16 %v670, %v666
      %v707 = vpack.c.bf16 %v671, %v667
      %v708 = vld [vmem:[%s3] sm:$0xf]
      %v709 = vld [vmem:[%s3 + $0x4] sm:$0xf]
      %v710 = vld [vmem:[%s3 + $0x8] sm:$0xf]
      %v711 = vld [vmem:[%s3 + $0xc] sm:$0xf]
      %v712 = vld [vmem:[%s3 + $0x10] sm:$0xf]
      %v713 = vld [vmem:[%s3 + $0x14] sm:$0xf]
      %v714 = vld [vmem:[%s3 + $0x18] sm:$0xf]
      %v715 = vld [vmem:[%s3 + $0x1c] sm:$0xf]
      %v716 = vld [vmem:[%s3 + $0x20] sm:$0xf]
      %v717 = vld [vmem:[%s3 + $0x24] sm:$0xf]
      %v718 = vld [vmem:[%s3 + $0x28] sm:$0xf]
      %v719 = vld [vmem:[%s3 + $0x2c] sm:$0xf]
      %v720 = vld [vmem:[%s3 + $0x30] sm:$0xf]
      %v721 = vld [vmem:[%s3 + $0x34] sm:$0xf]
      %v722 = vld [vmem:[%s3 + $0x38] sm:$0xf]
      %v723 = vld [vmem:[%s3 + $0x3c] sm:$0xf]
      %v724 = vld [vmem:[%s3 + $0x40] sm:$0xf]
      %v725 = vld [vmem:[%s3 + $0x44] sm:$0xf]
      %v726 = vld [vmem:[%s3 + $0x48] sm:$0xf]
      %v727 = vld [vmem:[%s3 + $0x4c] sm:$0xf]
      %v728 = vld [vmem:[%s3 + $0x50] sm:$0xf]
      %v729 = vld [vmem:[%s3 + $0x54] sm:$0xf]
      %v730 = vld [vmem:[%s3 + $0x58] sm:$0xf]
      %v731 = vld [vmem:[%s3 + $0x5c] sm:$0xf]
      %v732 = vld [vmem:[%s3 + $0x60] sm:$0xf]
      %v733 = vld [vmem:[%s3 + $0x64] sm:$0xf]
      %v734 = vld [vmem:[%s3 + $0x68] sm:$0xf]
      %v735 = vld [vmem:[%s3 + $0x6c] sm:$0xf]
      %v736 = vld [vmem:[%s3 + $0x70] sm:$0xf]
      %v737 = vld [vmem:[%s3 + $0x74] sm:$0xf]
      %v738 = vld [vmem:[%s3 + $0x78] sm:$0xf]
      %v739 = vld [vmem:[%s3 + $0x7c] sm:$0xf]
      %v740 = vld [vmem:[%s3 + $0x80] sm:$0xf]
      %v741 = vld [vmem:[%s3 + $0x84] sm:$0xf]
      %v742 = vld [vmem:[%s3 + $0x88] sm:$0xf]
      %v743 = vld [vmem:[%s3 + $0x8c] sm:$0xf]
      %v744 = vld [vmem:[%s3 + $0x90] sm:$0xf]
      %v745 = vld [vmem:[%s3 + $0x94] sm:$0xf]
      %v746 = vld [vmem:[%s3 + $0x98] sm:$0xf]
      %v747 = vld [vmem:[%s3 + $0x9c] sm:$0xf]
      %v748 = vld [vmem:[%s3 + $0xa0] sm:$0xf]
      %v749 = vld [vmem:[%s3 + $0xa4] sm:$0xf]
      %v750 = vld [vmem:[%s3 + $0xa8] sm:$0xf]
      %v751 = vld [vmem:[%s3 + $0xac] sm:$0xf]
      %v752 = vld [vmem:[%s3 + $0xb0] sm:$0xf]
      %v753 = vld [vmem:[%s3 + $0xb4] sm:$0xf]
      %v754 = vld [vmem:[%s3 + $0xb8] sm:$0xf]
      %v755 = vld [vmem:[%s3 + $0xbc] sm:$0xf]
      %v756 = vld [vmem:[%s3 + $0xc0] sm:$0xf]
      %v757 = vld [vmem:[%s3 + $0xc4] sm:$0xf]
      %v758 = vld [vmem:[%s3 + $0xc8] sm:$0xf]
      %v759 = vld [vmem:[%s3 + $0xcc] sm:$0xf]
      %v760 = vld [vmem:[%s3 + $0xd0] sm:$0xf]
      %v761 = vld [vmem:[%s3 + $0xd4] sm:$0xf]
      %v762 = vld [vmem:[%s3 + $0xd8] sm:$0xf]
      %v763 = vld [vmem:[%s3 + $0xdc] sm:$0xf]
      %v764 = vld [vmem:[%s3 + $0xe0] sm:$0xf]
      %v765 = vld [vmem:[%s3 + $0xe4] sm:$0xf]
      %v766 = vld [vmem:[%s3 + $0xe8] sm:$0xf]
      %v767 = vld [vmem:[%s3 + $0xec] sm:$0xf]
      %v768 = vld [vmem:[%s3 + $0xf0] sm:$0xf]
      %v769 = vld [vmem:[%s3 + $0xf4] sm:$0xf]
      %v770 = vld [vmem:[%s3 + $0xf8] sm:$0xf]
      %v771 = vld [vmem:[%s3 + $0xfc] sm:$0xf]
      %v772 = vld [vmem:[%s4] sm:$0x1]
      %v774 = vlaneseq
      %v775 = vshrl.u32 %v774, 7
      %v776 = vsub.s32 0, %v775
      %v777 = vrot.slane %v772, %v776
      %v843 = vunpack.c.l.b16 %v708
      %v844 = vunpack.c.l.b16 %v709
      %v845 = vunpack.c.l.b16 %v710
      %v846 = vunpack.c.l.b16 %v711
      %v847 = vunpack.c.l.b16 %v712
      %v848 = vunpack.c.l.b16 %v713
      %v849 = vunpack.c.l.b16 %v714
      %v850 = vunpack.c.l.b16 %v715
      %v851 = vunpack.c.l.b16 %v716
      %v852 = vunpack.c.l.b16 %v717
      %v853 = vunpack.c.l.b16 %v718
      %v854 = vunpack.c.l.b16 %v719
      %v855 = vunpack.c.l.b16 %v720
      %v856 = vunpack.c.l.b16 %v721
      %v857 = vunpack.c.l.b16 %v722
      %v858 = vunpack.c.l.b16 %v723
      %v859 = vunpack.c.l.b16 %v724
      %v860 = vunpack.c.l.b16 %v725
      %v861 = vunpack.c.l.b16 %v726
      %v862 = vunpack.c.l.b16 %v727
      %v863 = vunpack.c.l.b16 %v728
      %v864 = vunpack.c.l.b16 %v729
      %v865 = vunpack.c.l.b16 %v730
      %v866 = vunpack.c.l.b16 %v731
      %v867 = vunpack.c.l.b16 %v732
      %v868 = vunpack.c.l.b16 %v733
      %v869 = vunpack.c.l.b16 %v734
      %v870 = vunpack.c.l.b16 %v735
      %v871 = vunpack.c.l.b16 %v736
      %v872 = vunpack.c.l.b16 %v737
      %v873 = vunpack.c.l.b16 %v738
      %v874 = vunpack.c.l.b16 %v739
      %v875 = vunpack.c.l.b16 %v740
      %v876 = vunpack.c.l.b16 %v741
      %v877 = vunpack.c.l.b16 %v742
      %v878 = vunpack.c.l.b16 %v743
      %v879 = vunpack.c.l.b16 %v744
      %v880 = vunpack.c.l.b16 %v745
      %v881 = vunpack.c.l.b16 %v746
      %v882 = vunpack.c.l.b16 %v747
      %v883 = vunpack.c.l.b16 %v748
      %v884 = vunpack.c.l.b16 %v749
      %v885 = vunpack.c.l.b16 %v750
      %v886 = vunpack.c.l.b16 %v751
      %v887 = vunpack.c.l.b16 %v752
      %v888 = vunpack.c.l.b16 %v753
      %v889 = vunpack.c.l.b16 %v754
      %v890 = vunpack.c.l.b16 %v755
      %v891 = vunpack.c.l.b16 %v756
      %v892 = vunpack.c.l.b16 %v757
      %v893 = vunpack.c.l.b16 %v758
      %v894 = vunpack.c.l.b16 %v759
      %v895 = vunpack.c.l.b16 %v760
      %v896 = vunpack.c.l.b16 %v761
      %v897 = vunpack.c.l.b16 %v762
      %v898 = vunpack.c.l.b16 %v763
      %v899 = vunpack.c.l.b16 %v764
      %v900 = vunpack.c.l.b16 %v765
      %v901 = vunpack.c.l.b16 %v766
      %v902 = vunpack.c.l.b16 %v767
      %v903 = vunpack.c.l.b16 %v768
      %v904 = vunpack.c.l.b16 %v769
      %v905 = vunpack.c.l.b16 %v770
      %v906 = vunpack.c.l.b16 %v771
      %v907 = vpack.c.b16 %v844, %v843
      %v908 = vpack.c.b16 %v846, %v845
      %v909 = vpack.c.b16 %v848, %v847
      %v910 = vpack.c.b16 %v850, %v849
      %v911 = vpack.c.b16 %v852, %v851
      %v912 = vpack.c.b16 %v854, %v853
      %v913 = vpack.c.b16 %v856, %v855
      %v914 = vpack.c.b16 %v858, %v857
      %v915 = vpack.c.b16 %v860, %v859
      %v916 = vpack.c.b16 %v862, %v861
      %v917 = vpack.c.b16 %v864, %v863
      %v918 = vpack.c.b16 %v866, %v865
      %v919 = vpack.c.b16 %v868, %v867
      %v920 = vpack.c.b16 %v870, %v869
      %v921 = vpack.c.b16 %v872, %v871
      %v922 = vpack.c.b16 %v874, %v873
      %v923 = vpack.c.b16 %v876, %v875
      %v924 = vpack.c.b16 %v878, %v877
      %v925 = vpack.c.b16 %v880, %v879
      %v926 = vpack.c.b16 %v882, %v881
      %v927 = vpack.c.b16 %v884, %v883
      %v928 = vpack.c.b16 %v886, %v885
      %v929 = vpack.c.b16 %v888, %v887
      %v930 = vpack.c.b16 %v890, %v889
      %v931 = vpack.c.b16 %v892, %v891
      %v932 = vpack.c.b16 %v894, %v893
      %v933 = vpack.c.b16 %v896, %v895
      %v934 = vpack.c.b16 %v898, %v897
      %v935 = vpack.c.b16 %v900, %v899
      %v936 = vpack.c.b16 %v902, %v901
      %v937 = vpack.c.b16 %v904, %v903
      %v938 = vpack.c.b16 %v906, %v905
      %971 = vmatprep.subr.bf16.mxu0 0
      %972 = vmatpush1.bf16.msra.mxu0 %v914
      %973 = vmatprep.subr.bf16.mxu0 0
      %974 = vmatpush1.bf16.msra.mxu0 %v913
      %975 = vmatprep.subr.bf16.mxu0 0
      %976 = vmatpush1.bf16.msra.mxu0 %v912
      %977 = vmatprep.subr.bf16.mxu0 0
      %978 = vmatpush1.bf16.msra.mxu0 %v911
      %979 = vmatprep.subr.bf16.mxu0 0
      %980 = vmatpush1.bf16.msra.mxu0 %v910
      %981 = vmatprep.subr.bf16.mxu0 0
      %982 = vmatpush1.bf16.msra.mxu0 %v909
      %983 = vmatprep.subr.bf16.mxu0 0
      %984 = vmatpush1.bf16.msra.mxu0 %v908
      %985 = vmatprep.subr.bf16.mxu0 0
      %986 = vmatpush1.bf16.msra.mxu0 %v907
      %987 = vmatprep.subr.bf16.mxu0 0
      %988 = vmatpush2.bf16.msra.mxu0 %v922
      %989 = vmatprep.subr.bf16.mxu0 0
      %990 = vmatpush2.bf16.msra.mxu0 %v921
      %991 = vmatprep.subr.bf16.mxu0 0
      %992 = vmatpush2.bf16.msra.mxu0 %v920
      %993 = vmatprep.subr.bf16.mxu0 0
      %994 = vmatpush2.bf16.msra.mxu0 %v919
      %995 = vmatprep.subr.bf16.mxu0 0
      %996 = vmatpush2.bf16.msra.mxu0 %v918
      %997 = vmatprep.subr.bf16.mxu0 0
      %998 = vmatpush2.bf16.msra.mxu0 %v917
      %999 = vmatprep.subr.bf16.mxu0 0
      %1000 = vmatpush2.bf16.msra.mxu0 %v916
      %1001 = vmatprep.subr.bf16.mxu0 0
      %1002 = vmatpush2.bf16.msra.mxu0 %v915
      %1003 = vmatprep.mubr.bf16.mxu0 %v673
      %1004 = vmatmul.mubr.bf16.gmra.mxu0 %v672
      %v1005 = vpop.f32.mrf.mxu0
      %v1006 = vadd.f32 %v777, %v1005
      %v1007 = vpop.f32.mrf.mxu0
      %v1008 = vpop.f32.mrf.mxu0
      %v1009 = vadd.f32 %v777, %v1008
      %v1010 = vpop.f32.mrf.mxu0
      %1011 = vmatprep.mubr.bf16.mxu0 %v677
      %1012 = vmatmul.mubr.bf16.gmra.mxu0 %v676
      %v1013 = vpop.f32.mrf.mxu0
      %v1014 = vadd.f32 %v777, %v1013
      %v1015 = vpop.f32.mrf.mxu0
      %v1016 = vpop.f32.mrf.mxu0
      %v1017 = vadd.f32 %v777, %v1016
      %v1018 = vpop.f32.mrf.mxu0
      %1019 = vmatprep.mubr.bf16.mxu0 %v681
      %1020 = vmatmul.mubr.bf16.gmra.mxu0 %v680
      %v1021 = vpop.f32.mrf.mxu0
      %v1022 = vadd.f32 %v777, %v1021
      %v1023 = vpop.f32.mrf.mxu0
      %v1024 = vpop.f32.mrf.mxu0
      %v1025 = vadd.f32 %v777, %v1024
      %v1026 = vpop.f32.mrf.mxu0
      %1027 = vmatprep.mubr.bf16.mxu0 %v685
      %1028 = vmatmul.mubr.bf16.gmra.mxu0 %v684
      %v1029 = vpop.f32.mrf.mxu0
      %v1030 = vadd.f32 %v777, %v1029
      %v1031 = vpop.f32.mrf.mxu0
      %v1032 = vpop.f32.mrf.mxu0
      %v1033 = vadd.f32 %v777, %v1032
      %v1034 = vpop.f32.mrf.mxu0
      %1035 = vmatprep.mubr.bf16.mxu0 %v689
      %1036 = vmatmul.mubr.bf16.gmra.mxu0 %v688
      %v1037 = vpop.f32.mrf.mxu0
      %v1038 = vadd.f32 %v777, %v1037
      %v1039 = vpop.f32.mrf.mxu0
      %v1040 = vpop.f32.mrf.mxu0
      %v1041 = vadd.f32 %v777, %v1040
      %v1042 = vpop.f32.mrf.mxu0
      %1043 = vmatprep.mubr.bf16.mxu0 %v693
      %1044 = vmatmul.mubr.bf16.gmra.mxu0 %v692
      %v1045 = vpop.f32.mrf.mxu0
      %v1046 = vadd.f32 %v777, %v1045
      %v1047 = vpop.f32.mrf.mxu0
      %v1048 = vpop.f32.mrf.mxu0
      %v1049 = vadd.f32 %v777, %v1048
      %v1050 = vpop.f32.mrf.mxu0
      %1051 = vmatprep.mubr.bf16.mxu0 %v697
      %1052 = vmatmul.mubr.bf16.gmra.mxu0 %v696
      %v1053 = vpop.f32.mrf.mxu0
      %v1054 = vadd.f32 %v777, %v1053
      %v1055 = vpop.f32.mrf.mxu0
      %v1056 = vpop.f32.mrf.mxu0
      %v1057 = vadd.f32 %v777, %v1056
      %v1058 = vpop.f32.mrf.mxu0
      %1059 = vmatprep.mubr.bf16.mxu0 %v701
      %1060 = vmatmul.mubr.bf16.gmra.mxu0 %v700
      %v1061 = vpop.f32.mrf.mxu0
      %v1062 = vadd.f32 %v777, %v1061
      %v1063 = vpop.f32.mrf.mxu0
      %v1064 = vpop.f32.mrf.mxu0
      %v1065 = vadd.f32 %v777, %v1064
      %v1066 = vpop.f32.mrf.mxu0
      %1067 = vmatprep.mubr.bf16.mxu0 %v705
      %1068 = vmatmul.mubr.bf16.gmra.mxu0 %v704
      %v1069 = vpop.f32.mrf.mxu0
      %v1070 = vadd.f32 %v777, %v1069
      %v1071 = vpop.f32.mrf.mxu0
      %v1072 = vpop.f32.mrf.mxu0
      %v1073 = vadd.f32 %v777, %v1072
      %v1074 = vpop.f32.mrf.mxu0
      %1075 = vdwg.mxu0
      %1076 = vmatprep.subr.bf16.mxu0 0
      %1077 = vmatpush1.bf16.msra.mxu0 %v930
      %1078 = vmatprep.subr.bf16.mxu0 0
      %1079 = vmatpush1.bf16.msra.mxu0 %v929
      %1080 = vmatprep.subr.bf16.mxu0 0
      %1081 = vmatpush1.bf16.msra.mxu0 %v928
      %1082 = vmatprep.subr.bf16.mxu0 0
      %1083 = vmatpush1.bf16.msra.mxu0 %v927
      %1084 = vmatprep.subr.bf16.mxu0 0
      %1085 = vmatpush1.bf16.msra.mxu0 %v926
      %1086 = vmatprep.subr.bf16.mxu0 0
      %1087 = vmatpush1.bf16.msra.mxu0 %v925
      %1088 = vmatprep.subr.bf16.mxu0 0
      %1089 = vmatpush1.bf16.msra.mxu0 %v924
      %1090 = vmatprep.subr.bf16.mxu0 0
      %1091 = vmatpush1.bf16.msra.mxu0 %v923
      %1092 = vmatprep.subr.bf16.mxu0 0
      %1093 = vmatpush2.bf16.msra.mxu0 %v938
      %1094 = vmatprep.subr.bf16.mxu0 0
      %1095 = vmatpush2.bf16.msra.mxu0 %v937
      %1096 = vmatprep.subr.bf16.mxu0 0
      %1097 = vmatpush2.bf16.msra.mxu0 %v936
      %1098 = vmatprep.subr.bf16.mxu0 0
      %1099 = vmatpush2.bf16.msra.mxu0 %v935
      %1100 = vmatprep.subr.bf16.mxu0 0
      %1101 = vmatpush2.bf16.msra.mxu0 %v934
      %1102 = vmatprep.subr.bf16.mxu0 0
      %1103 = vmatpush2.bf16.msra.mxu0 %v933
      %1104 = vmatprep.subr.bf16.mxu0 0
      %1105 = vmatpush2.bf16.msra.mxu0 %v932
      %1106 = vmatprep.subr.bf16.mxu0 0
      %1107 = vmatpush2.bf16.msra.mxu0 %v931
      %1108 = vmatprep.mubr.bf16.mxu0 %v675
      %1109 = vmatmul.mubr.bf16.gmra.mxu0 %v674
      %v1110 = vpop.f32.mrf.mxu0
      %v1111 = vadd.f32 %v1006, %v1110
      %v1112 = vpop.f32.mrf.mxu0
      %v1113 = vpop.f32.mrf.mxu0
      %v1114 = vadd.f32 %v1009, %v1113
      %v1115 = vpop.f32.mrf.mxu0
      %1116 = vmatprep.mubr.bf16.mxu0 %v679
      %1117 = vmatmul.mubr.bf16.gmra.mxu0 %v678
      %v1118 = vpop.f32.mrf.mxu0
      %v1119 = vadd.f32 %v1014, %v1118
      %v1120 = vpop.f32.mrf.mxu0
      %v1121 = vpop.f32.mrf.mxu0
      %v1122 = vadd.f32 %v1017, %v1121
      %v1123 = vpop.f32.mrf.mxu0
      %1124 = vmatprep.mubr.bf16.mxu0 %v683
      %1125 = vmatmul.mubr.bf16.gmra.mxu0 %v682
      %v1126 = vpop.f32.mrf.mxu0
      %v1127 = vadd.f32 %v1022, %v1126
      %v1128 = vpop.f32.mrf.mxu0
      %v1129 = vpop.f32.mrf.mxu0
      %v1130 = vadd.f32 %v1025, %v1129
      %v1131 = vpop.f32.mrf.mxu0
      %1132 = vmatprep.mubr.bf16.mxu0 %v687
      %1133 = vmatmul.mubr.bf16.gmra.mxu0 %v686
      %v1134 = vpop.f32.mrf.mxu0
      %v1135 = vadd.f32 %v1030, %v1134
      %v1136 = vpop.f32.mrf.mxu0
      %v1137 = vpop.f32.mrf.mxu0
      %v1138 = vadd.f32 %v1033, %v1137
      %v1139 = vpop.f32.mrf.mxu0
      %1140 = vmatprep.mubr.bf16.mxu0 %v691
      %1141 = vmatmul.mubr.bf16.gmra.mxu0 %v690
      %v1142 = vpop.f32.mrf.mxu0
      %v1143 = vadd.f32 %v1038, %v1142
      %v1144 = vpop.f32.mrf.mxu0
      %v1145 = vpop.f32.mrf.mxu0
      %v1146 = vadd.f32 %v1041, %v1145
      %v1147 = vpop.f32.mrf.mxu0
      %1148 = vmatprep.mubr.bf16.mxu0 %v695
      %1149 = vmatmul.mubr.bf16.gmra.mxu0 %v694
      %v1150 = vpop.f32.mrf.mxu0
      %v1151 = vadd.f32 %v1046, %v1150
      %v1152 = vpop.f32.mrf.mxu0
      %v1153 = vpop.f32.mrf.mxu0
      %v1154 = vadd.f32 %v1049, %v1153
      %v1155 = vpop.f32.mrf.mxu0
      %1156 = vmatprep.mubr.bf16.mxu0 %v699
      %1157 = vmatmul.mubr.bf16.gmra.mxu0 %v698
      %v1158 = vpop.f32.mrf.mxu0
      %v1159 = vadd.f32 %v1054, %v1158
      %v1160 = vpop.f32.mrf.mxu0
      %v1161 = vpop.f32.mrf.mxu0
      %v1162 = vadd.f32 %v1057, %v1161
      %v1163 = vpop.f32.mrf.mxu0
      %1164 = vmatprep.mubr.bf16.mxu0 %v703
      %1165 = vmatmul.mubr.bf16.gmra.mxu0 %v702
      %v1166 = vpop.f32.mrf.mxu0
      %v1167 = vadd.f32 %v1062, %v1166
      %v1168 = vpop.f32.mrf.mxu0
      %v1169 = vpop.f32.mrf.mxu0
      %v1170 = vadd.f32 %v1065, %v1169
      %v1171 = vpop.f32.mrf.mxu0
      %1172 = vmatprep.mubr.bf16.mxu0 %v707
      %1173 = vmatmul.mubr.bf16.gmra.mxu0 %v706
      %v1174 = vpop.f32.mrf.mxu0
      %v1175 = vadd.f32 %v1070, %v1174
      %v1176 = vpop.f32.mrf.mxu0
      %v1177 = vpop.f32.mrf.mxu0
      %v1178 = vadd.f32 %v1073, %v1177
      %v1179 = vpop.f32.mrf.mxu0
      %1180 = vdwg.mxu0
      %v1181 = vmax.f32 %v1111, 0.0
      %v1182 = vmax.f32 %v1114, 0.0
      %v1183 = vmax.f32 %v1119, 0.0
      %v1184 = vmax.f32 %v1122, 0.0
      %v1185 = vmax.f32 %v1127, 0.0
      %v1186 = vmax.f32 %v1130, 0.0
      %v1187 = vmax.f32 %v1135, 0.0
      %v1188 = vmax.f32 %v1138, 0.0
      %v1189 = vmax.f32 %v1143, 0.0
      %v1190 = vmax.f32 %v1146, 0.0
      %v1191 = vmax.f32 %v1151, 0.0
      %v1192 = vmax.f32 %v1154, 0.0
      %v1193 = vmax.f32 %v1159, 0.0
      %v1194 = vmax.f32 %v1162, 0.0
      %v1195 = vmax.f32 %v1167, 0.0
      %v1196 = vmax.f32 %v1170, 0.0
      %v1197 = vmax.f32 %v1175, 0.0
      %v1198 = vmax.f32 %v1178, 0.0
      %vm1199 = vcmask 130048
      %1200 = vst.msk [vmem:[%s226] sm:$0xff] %vm1199, %v1181
      %1201 = vst.msk [vmem:[%s226 + $0x8] sm:$0xff] %vm1199, %v1182
      %1202 = vst.msk [vmem:[%s226 + $0x10] sm:$0xff] %vm1199, %v1183
      %1203 = vst.msk [vmem:[%s226 + $0x18] sm:$0xff] %vm1199, %v1184
      %1204 = vst.msk [vmem:[%s226 + $0x20] sm:$0xff] %vm1199, %v1185
      %1205 = vst.msk [vmem:[%s226 + $0x28] sm:$0xff] %vm1199, %v1186
      %1206 = vst.msk [vmem:[%s226 + $0x30] sm:$0xff] %vm1199, %v1187
      %1207 = vst.msk [vmem:[%s226 + $0x38] sm:$0xff] %vm1199, %v1188
      %1208 = vst.msk [vmem:[%s226 + $0x40] sm:$0xff] %vm1199, %v1189
      %1209 = vst.msk [vmem:[%s226 + $0x48] sm:$0xff] %vm1199, %v1190
      %1210 = vst.msk [vmem:[%s226 + $0x50] sm:$0xff] %vm1199, %v1191
      %1211 = vst.msk [vmem:[%s226 + $0x58] sm:$0xff] %vm1199, %v1192
      %1212 = vst.msk [vmem:[%s226 + $0x60] sm:$0xff] %vm1199, %v1193
      %1213 = vst.msk [vmem:[%s226 + $0x68] sm:$0xff] %vm1199, %v1194
      %1214 = vst.msk [vmem:[%s226 + $0x70] sm:$0xff] %vm1199, %v1195
      %1215 = vst.msk [vmem:[%s226 + $0x78] sm:$0xff] %vm1199, %v1196
      %1216 = vst.msk [vmem:[%s226 + $0x80] sm:$0xff] %vm1199, %v1197
      %1217 = vst.msk [vmem:[%s226 + $0x88] sm:$0xff] %vm1199, %v1198
      %s1218 = smul.u32 18, %s16
      %p1219 = scmp.lt.s32.totalorder %s1218, 35
      %s1220 = scalar_select %p1219, %s1218, 35
      %s1221 = smul.addr %s1220, 8
      %s1222 = scalar_lea.vmem %s5, %s1221
      // Predicated region
      $region41: #{tpu_custom_call.1} parent=39 // pred_check
        %p1223 = pneg %p144
      $region42: #{tpu_custom_call.1} parent=39 // pred_check_branch
        %1225 = sbr.rel (%p1223) target = $region44
      $region43: #{tpu_custom_call.1} parent=39 // pred_region
        %s1226 = smul.u32 18, %s16
      $region44: #{tpu_custom_call.1} parent=39 // pred_fallthru
        _
    $region40: #{tpu_custom_call.1} parent=5 // pred_fallthru
      _
    %p1227 = scmp.le.s32.totalorder 2, %s11
    // Predicated region
    $region45: #{tpu_custom_call.1} parent=5 // pred_check
      %p1228 = pneg %p1227
    $region46: #{tpu_custom_call.1} parent=5 // pred_check_branch
      %1230 = sbr.rel (%p1228) target = $region48
    $region47: #{tpu_custom_call.1} parent=5 // pred_region
      %s1231 = ssub.s32 %s11, 2
      // Predicated region
      $region49: #{tpu_custom_call.1} parent=47 // pred_check
        %p1232 = pneg %p150
      $region50: #{tpu_custom_call.1} parent=47 // pred_check_branch
        %1234 = sbr.rel (%p1232) target = $region52
      $region51: #{tpu_custom_call.1} parent=47 // pred_region
        %s1235 = smul.u32 18, %s17
        %p1236 = scmp.lt.s32.totalorder %s1235, 35
        %s1237 = scalar_select %p1236, %s1235, 35
        %s1238 = smul.addr %s1237, 8
        %s1239 = scalar_lea.vmem %s5, %s1238
      $region52: #{tpu_custom_call.1} parent=47 // pred_fallthru
        _
    $region48: #{tpu_custom_call.1} parent=5 // pred_fallthru
      _
  $region6: #{tpu_custom_call.1} parent=0 // loop_footer
    %s15 = sadd.s32 1, %s11
  $region7: #{tpu_custom_call.1} parent=0 // loop_footer_branch
    %10 = sbr.rel target = $region3
  $region8: #{tpu_custom_call.1} parent=0 // loop_exit
    _

// kernel: tpu_custom_call.1
$region0: #{tpu_custom_call.1}
  #allocation0 [shape = 'u32[]', space=smem, size = 0x4, offset = 0x4, fixed_abs, tag = 'smem constant byte address 0x4 - core index']
  #allocation1 [shape = 'u32[144,128]{1,0:T(1,128)}', space=vmem, size = 0x12000, scoped, tag = 'internal scratch']
  %s0 = inlined_call_operand.vmem [shape: f32[288,32], index: 0, kind: input, shape index: {}]
  %s1 = inlined_call_operand.vmem [shape: bf16[32,512], index: 1, kind: input, shape index: {}]
  %s2 = inlined_call_operand.vmem [shape: f32[1,512], index: 2, kind: input, shape index: {}]
  %s3 = inlined_call_operand.vmem [shape: bf16[512,16], index: 3, kind: input, shape index: {}]
  %s4 = inlined_call_operand.vmem [shape: f32[1,16], index: 4, kind: input, shape index: {}]
  %s5 = inlined_call_operand.vmem [shape: f32[288,16], index: 5, kind: output, shape index: {}]
  %s6 = sld [smem:[#allocation0]]
  $region53: #{tpu_custom_call.1} parent=0
    _
  %s8 = ssub.s32 1, %s6
  %s9 = scalar_select 0, %s8, %s6
  loop: start=0, step=1, limit=4
  $region2: #{tpu_custom_call.1} parent=0 // loop_pre_header
    _
  $region3: #{tpu_custom_call.1} parent=0 // loop_header
    %s11 = sphi 0, %s15
    %p12 = scmp.ge.s32.totalorder %s11, 4
    %s21 = sphi 0, %s23
    %s24 = sphi 0, %s21
    %s25 = sphi 0, %s24
    %s41 = sphi 0, %s25
    %s45 = sphi 0, %s45
    %s47 = sphi 0, %s45
    %s48 = sphi 0, %s47
    %s62 = sphi 0, %s48
    %s66 = sphi 0, %s66
    %s68 = sphi 0, %s66
    %s69 = sphi 0, %s68
    %s83 = sphi 0, %s69
    %s87 = sphi 0, %s87
    %s89 = sphi 0, %s87
    %s90 = sphi 0, %s89
    %s104 = sphi 0, %s90
    %s108 = sphi 0, %s108
    %s110 = sphi 0, %s108
    %s111 = sphi 0, %s110
    %s125 = sphi 0, %s111
    %s131 = sphi 0, %s133
    %s134 = sphi 0, %s131
    %s135 = sphi 0, %s134
    %s151 = sphi 0, %s135
  $region4: #{tpu_custom_call.1} parent=0 // loop_header_branch
    %14 = sbr.rel (%p12) target = $region8
  $region5: #{tpu_custom_call.1} parent=0 // loop_body
    %s16 = ssub.s32 %s11, 1
    %s17 = ssub.s32 %s11, 2
    %s18 = sadd.s32 %s11, 1
    %s19 = ssub.s32 %s11, %s18
    %p20 = scmp.eq.s32.totalorder %s19, 0
    %s22 = sadd.s32 %s21, 1
    %s23 = scalar_select %p20, %s21, %s22
    %p26 = pneg %p20
    %p27 = scmp.eq.s32.totalorder %s11, 1
    %p28 = por %p26, %p27
    %p29 = scmp.ne.s32.totalorder %s21, %s24
    %p30 = scmp.eq.s32.totalorder %s11, 0
    %p31 = por %p29, %p30
    %p32 = scmp.ne.s32.totalorder %s21, %s24
    %p33 = scmp.eq.s32.totalorder %s16, 1
    %p34 = por %p32, %p33
    %p35 = scmp.ne.s32.totalorder %s24, %s25
    %p36 = scmp.eq.s32.totalorder %s16, 0
    %p37 = por %p35, %p36
    %p38 = scmp.ne.s32.totalorder %s24, %s25
    %p39 = scmp.eq.s32.totalorder %s17, 1
    %p40 = por %p38, %p39
    %p42 = scmp.ne.s32.totalorder %s25, %s41
    %p43 = scmp.eq.s32.totalorder %s17, 0
    %p44 = por %p42, %p43
    %s46 = sadd.s32 %s45, 1
    %p49 = scmp.eq.s32.totalorder %s11, 1
    %p50 = scmp.ne.s32.totalorder %s45, %s47
    %p51 = scmp.eq.s32.totalorder %s11, 0
    %p52 = por %p50, %p51
    %p53 = scmp.ne.s32.totalorder %s45, %s47
    %p54 = scmp.eq.s32.totalorder %s16, 1
    %p55 = por %p53, %p54
    %p56 = scmp.ne.s32.totalorder %s47, %s48
    %p57 = scmp.eq.s32.totalorder %s16, 0
    %p58 = por %p56, %p57
    %p59 = scmp.ne.s32.totalorder %s47, %s48
    %p60 = scmp.eq.s32.totalorder %s17, 1
    %p61 = por %p59, %p60
    %p63 = scmp.ne.s32.totalorder %s48, %s62
    %p64 = scmp.eq.s32.totalorder %s17, 0
    %p65 = por %p63, %p64
    %s67 = sadd.s32 %s66, 1
    %p70 = scmp.eq.s32.totalorder %s11, 1
    %p71 = scmp.ne.s32.totalorder %s66, %s68
    %p72 = scmp.eq.s32.totalorder %s11, 0
    %p73 = por %p71, %p72
    %p74 = scmp.ne.s32.totalorder %s66, %s68
    %p75 = scmp.eq.s32.totalorder %s16, 1
    %p76 = por %p74, %p75
    %p77 = scmp.ne.s32.totalorder %s68, %s69
    %p78 = scmp.eq.s32.totalorder %s16, 0
    %p79 = por %p77, %p78
    %p80 = scmp.ne.s32.totalorder %s68, %s69
    %p81 = scmp.eq.s32.totalorder %s17, 1
    %p82 = por %p80, %p81
    %p84 = scmp.ne.s32.totalorder %s69, %s83
    %p85 = scmp.eq.s32.totalorder %s17, 0
    %p86 = por %p84, %p85
    %s88 = sadd.s32 %s87, 1
    %p91 = scmp.eq.s32.totalorder %s11, 1
    %p92 = scmp.ne.s32.totalorder %s87, %s89
    %p93 = scmp.eq.s32.totalorder %s11, 0
    %p94 = por %p92, %p93
    %p95 = scmp.ne.s32.totalorder %s87, %s89
    %p96 = scmp.eq.s32.totalorder %s16, 1
    %p97 = por %p95, %p96
    %p98 = scmp.ne.s32.totalorder %s89, %s90
    %p99 = scmp.eq.s32.totalorder %s16, 0
    %p100 = por %p98, %p99
    %p101 = scmp.ne.s32.totalorder %s89, %s90
    %p102 = scmp.eq.s32.totalorder %s17, 1
    %p103 = por %p101, %p102
    %p105 = scmp.ne.s32.totalorder %s90, %s104
    %p106 = scmp.eq.s32.totalorder %s17, 0
    %p107 = por %p105, %p106
    %s109 = sadd.s32 %s108, 1
    %p112 = scmp.eq.s32.totalorder %s11, 1
    %p113 = scmp.ne.s32.totalorder %s108, %s110
    %p114 = scmp.eq.s32.totalorder %s11, 0
    %p115 = por %p113, %p114
    %p116 = scmp.ne.s32.totalorder %s108, %s110
    %p117 = scmp.eq.s32.totalorder %s16, 1
    %p118 = por %p116, %p117
    %p119 = scmp.ne.s32.totalorder %s110, %s111
    %p120 = scmp.eq.s32.totalorder %s16, 0
    %p121 = por %p119, %p120
    %p122 = scmp.ne.s32.totalorder %s110, %s111
    %p123 = scmp.eq.s32.totalorder %s17, 1
    %p124 = por %p122, %p123
    %p126 = scmp.ne.s32.totalorder %s111, %s125
    %p127 = scmp.eq.s32.totalorder %s17, 0
    %p128 = por %p126, %p127
    %s129 = ssub.s32 %s11, %s18
    %p130 = scmp.eq.s32.totalorder %s129, 0
    %s132 = sadd.s32 %s131, 1
    %s133 = scalar_select %p130, %s131, %s132
    %p136 = pneg %p130
    %p137 = scmp.eq.s32.totalorder %s11, 1
    %p138 = por %p136, %p137
    %p139 = scmp.ne.s32.totalorder %s131, %s134
    %p140 = scmp.eq.s32.totalorder %s11, 0
    %p141 = por %p139, %p140
    %p142 = scmp.ne.s32.totalorder %s131, %s134
    %p143 = scmp.eq.s32.totalorder %s16, 1
    %p144 = por %p142, %p143
    %p145 = scmp.ne.s32.totalorder %s134, %s135
    %p146 = scmp.eq.s32.totalorder %s16, 0
    %p147 = por %p145, %p146
    %p148 = scmp.ne.s32.totalorder %s134, %s135
    %p149 = scmp.eq.s32.totalorder %s17, 1
    %p150 = por %p148, %p149
    %p152 = scmp.ne.s32.totalorder %s135, %s151
    %p153 = scmp.eq.s32.totalorder %s17, 0
    %p154 = por %p152, %p153
    %p155 = scmp.le.s32.totalorder 1, %s11
    %p156 = scmp.lt.s32.totalorder %s11, 3
    %p157 = pnand %p155, %p156
    %p158 = pneg %p157
    // Predicated region
    $region9: #{tpu_custom_call.1} parent=5 // pred_check
      _
    $region10: #{tpu_custom_call.1} parent=5 // pred_check_branch
      %160 = sbr.rel (%p157) target = $region12
    $region11: #{tpu_custom_call.1} parent=5 // pred_region
      %s161 = ssub.s32 %s11, 1
      // Predicated region
      $region13: #{tpu_custom_call.1} parent=11 // pred_check
        %p162 = pneg %p58
      $region14: #{tpu_custom_call.1} parent=11 // pred_check_branch
        %164 = sbr.rel (%p162) target = $region16
      $region15: #{tpu_custom_call.1} parent=11 // pred_region
        _
      $region16: #{tpu_custom_call.1} parent=11 // pred_fallthru
        _
      // Predicated region
      $region17: #{tpu_custom_call.1} parent=11 // pred_check
        %p165 = pneg %p79
      $region18: #{tpu_custom_call.1} parent=11 // pred_check_branch
        %167 = sbr.rel (%p165) target = $region20
      $region19: #{tpu_custom_call.1} parent=11 // pred_region
        _
      $region20: #{tpu_custom_call.1} parent=11 // pred_fallthru
        _
      // Predicated region
      $region21: #{tpu_custom_call.1} parent=11 // pred_check
        %p168 = pneg %p100
      $region22: #{tpu_custom_call.1} parent=11 // pred_check_branch
        %170 = sbr.rel (%p168) target = $region24
      $region23: #{tpu_custom_call.1} parent=11 // pred_region
        _
      $region24: #{tpu_custom_call.1} parent=11 // pred_fallthru
        _
      // Predicated region
      $region25: #{tpu_custom_call.1} parent=11 // pred_check
        %p171 = pneg %p121
      $region26: #{tpu_custom_call.1} parent=11 // pred_check_branch
        %173 = sbr.rel (%p171) target = $region28
      $region27: #{tpu_custom_call.1} parent=11 // pred_region
        _
      $region28: #{tpu_custom_call.1} parent=11 // pred_fallthru
        _
    $region12: #{tpu_custom_call.1} parent=5 // pred_fallthru
      _
    %p174 = scmp.lt.s32.totalorder %s11, 2
    // Predicated region
    $region29: #{tpu_custom_call.1} parent=5 // pred_check
      %p175 = pneg %p174
    $region30: #{tpu_custom_call.1} parent=5 // pred_check_branch
      %177 = sbr.rel (%p175) target = $region32
    $region31: #{tpu_custom_call.1} parent=5 // pred_region
      // Predicated region
      $region33: #{tpu_custom_call.1} parent=31 // pred_check
        %p178 = pneg %p31
      $region34: #{tpu_custom_call.1} parent=31 // pred_check_branch
        %180 = sbr.rel (%p178) target = $region36
      $region35: #{tpu_custom_call.1} parent=31 // pred_region
        %s181 = smul.u32 18, %s11
        %p182 = scmp.lt.s32.totalorder %s181, 35
        %s183 = scalar_select %p182, %s181, 35
        %s184 = smul.addr %s183, 8
        %s185 = scalar_lea.vmem %s0, %s184
        %s186 = smul.u32 18, %s11
      $region36: #{tpu_custom_call.1} parent=31 // pred_fallthru
        _
    $region32: #{tpu_custom_call.1} parent=5 // pred_fallthru
      _
    %p187 = scmp.le.s32.totalorder 1, %s11
    %p188 = scmp.lt.s32.totalorder %s11, 3
    %p189 = pnand %p187, %p188
    %p190 = pneg %p189
    // Predicated region
    $region37: #{tpu_custom_call.1} parent=5 // pred_check
      _
    $region38: #{tpu_custom_call.1} parent=5 // pred_check_branch
      %192 = sbr.rel (%p189) target = $region40
    $region39: #{tpu_custom_call.1} parent=5 // pred_region
      %s193 = ssub.s32 %s11, 1
      %s194 = smul.u32 18, %s16
      %p195 = scmp.lt.s32.totalorder %s194, 35
      %s196 = scalar_select %p195, %s194, 35
      %s197 = smul.addr %s196, 8
      %s198 = scalar_lea.vmem %s0, %s197
      %p199 = pneg %p37
      %p200 = pneg %p34
      %p201 = pneg %p58
      %p202 = pneg %p55
      %p203 = pneg %p79
      %p204 = pneg %p76
      %p205 = pneg %p100
      %p206 = pneg %p97
      %p207 = pneg %p121
      %p208 = pneg %p118
      %p209 = pneg %p147
      %p210 = pneg %p144
      %s211 = smul.u32 18, %s16
      %p212 = scmp.lt.s32.totalorder %s211, 35
      %s213 = scalar_select %p212, %s211, 35
      %s214 = smul.addr %s213, 8
      %s215 = scalar_lea.vmem %s5, %s214
      %s216 = smul.u32 18, %s16
      %p217 = scmp.lt.s32.totalorder %s216, 35
      %s218 = scalar_select %p217, %s216, 35
      %s219 = smul.addr %s218, 8
      %s220 = scalar_lea.vmem %s0, %s219
      %s221 = smul.u32 18, %s16
      %s222 = smul.u32 18, %s16
      %p223 = scmp.lt.s32.totalorder %s222, 35
      %s224 = scalar_select %p223, %s222, 35
      %s225 = smul.addr %s224, 8
      %s226 = scalar_lea.vmem %s5, %s225
      %s227 = smul.u32 18, %s16
      %v229 = vld [vmem:[%s220] sm:$0xff]
      %v230 = vld [vmem:[%s220 + $0x8] sm:$0xff]
      %v231 = vld [vmem:[%s220 + $0x10] sm:$0xff]
      %v232 = vld [vmem:[%s220 + $0x18] sm:$0xff]
      %v233 = vld [vmem:[%s220 + $0x20] sm:$0xff]
      %v234 = vld [vmem:[%s220 + $0x28] sm:$0xff]
      %v235 = vld [vmem:[%s220 + $0x30] sm:$0xff]
      %v236 = vld [vmem:[%s220 + $0x38] sm:$0xff]
      %v237 = vld [vmem:[%s220 + $0x40] sm:$0xff]
      %v238 = vld [vmem:[%s220 + $0x48] sm:$0xff]
      %v239 = vld [vmem:[%s220 + $0x50] sm:$0xff]
      %v240 = vld [vmem:[%s220 + $0x58] sm:$0xff]
      %v241 = vld [vmem:[%s220 + $0x60] sm:$0xff]
      %v242 = vld [vmem:[%s220 + $0x68] sm:$0xff]
      %v243 = vld [vmem:[%s220 + $0x70] sm:$0xff]
      %v244 = vld [vmem:[%s220 + $0x78] sm:$0xff]
      %v245 = vld [vmem:[%s220 + $0x80] sm:$0xff]
      %v246 = vld [vmem:[%s220 + $0x88] sm:$0xff]
      %v247 = vpack.c.bf16 %v230, %v229
      %v248 = vpack.c.bf16 %v232, %v231
      %v249 = vpack.c.bf16 %v234, %v233
      %v250 = vpack.c.bf16 %v236, %v235
      %v251 = vpack.c.bf16 %v238, %v237
      %v252 = vpack.c.bf16 %v240, %v239
      %v253 = vpack.c.bf16 %v242, %v241
      %v254 = vpack.c.bf16 %v244, %v243
      %v255 = vpack.c.bf16 %v246, %v245
      %v256 = vld [vmem:[%s1] sm:$0xff]
      %v257 = vld [vmem:[%s1 + $0x8] sm:$0xff]
      %v258 = vld [vmem:[%s1 + $0x10] sm:$0xff]
      %v259 = vld [vmem:[%s1 + $0x18] sm:$0xff]
      %v260 = vld [vmem:[%s1 + $0x20] sm:$0xff]
      %v261 = vld [vmem:[%s1 + $0x28] sm:$0xff]
      %v262 = vld [vmem:[%s1 + $0x30] sm:$0xff]
      %v263 = vld [vmem:[%s1 + $0x38] sm:$0xff]
      %v264 = vld [vmem:[%s2] sm:$0xf]
      %v266 = vlaneseq
      %v267 = vshrl.u32 %v266, 7
      %v268 = vsub.s32 0, %v267
      %v269 = vrot.slane %v264, %v268
      %v270 = vlaneseq
      %v271 = vshrl.u32 %v270, 7
      %v272 = vsub.s32 1, %v271
      %v273 = vrot.slane %v264, %v272
      %v274 = vlaneseq
      %v275 = vshrl.u32 %v274, 7
      %v276 = vsub.s32 2, %v275
      %v277 = vrot.slane %v264, %v276
      %v278 = vlaneseq
      %v279 = vshrl.u32 %v278, 7
      %v280 = vsub.s32 3, %v279
      %v281 = vrot.slane %v264, %v280
      %v294 = vunpack.c.l.b16 %v256
      %v295 = vunpack.c.h.b16 %v256
      %v296 = vunpack.c.l.b16 %v257
      %v297 = vunpack.c.h.b16 %v257
      %v298 = vunpack.c.l.b16 %v258
      %v299 = vunpack.c.h.b16 %v258
      %v300 = vunpack.c.l.b16 %v259
      %v301 = vunpack.c.h.b16 %v259
      %v302 = vunpack.c.l.b16 %v260
      %v303 = vunpack.c.h.b16 %v260
      %v304 = vunpack.c.l.b16 %v261
      %v305 = vunpack.c.h.b16 %v261
      %v306 = vunpack.c.l.b16 %v262
      %v307 = vunpack.c.h.b16 %v262
      %v308 = vunpack.c.l.b16 %v263
      %v309 = vunpack.c.h.b16 %v263
      %v310 = vpack.c.b16 %v298, %v294
      %v311 = vpack.c.b16 %v299, %v295
      %v312 = vpack.c.b16 %v300, %v296
      %v313 = vpack.c.b16 %v301, %v297
      %v314 = vpack.c.b16 %v306, %v302
      %v315 = vpack.c.b16 %v307, %v303
      %v316 = vpack.c.b16 %v308, %v304
      %v317 = vpack.c.b16 %v309, %v305
      %vm326 = vcmask 261120
      %v328 = vsel %vm326, %v247, 0
      %v331 = vsel %vm326, %v248, 0
      %v334 = vsel %vm326, %v249, 0
      %v337 = vsel %vm326, %v250, 0
      %v340 = vsel %vm326, %v251, 0
      %v343 = vsel %vm326, %v252, 0
      %v346 = vsel %vm326, %v253, 0
      %v349 = vsel %vm326, %v254, 0
      %v352 = vsel %vm326, %v255, 0
      %354 = vmatprep.subr.bf16.mxu0 0
      %355 = vmatpush1.bf16.msra.mxu0 0
      %356 = vmatprep.subr.bf16.mxu0 0
      %357 = vmatpush1.bf16.msra.mxu0 0
      %358 = vmatprep.subr.bf16.mxu0 0
      %359 = vmatpush1.bf16.msra.mxu0 0
      %360 = vmatprep.subr.bf16.mxu0 0
      %361 = vmatpush1.bf16.msra.mxu0 0
      %362 = vmatprep.subr.bf16.mxu0 0
      %363 = vmatpush1.bf16.msra.mxu0 0
      %364 = vmatprep.subr.bf16.mxu0 0
      %365 = vmatpush1.bf16.msra.mxu0 0
      %366 = vmatprep.subr.bf16.mxu0 %v315
      %367 = vmatpush1.bf16.msra.mxu0 %v314
      %368 = vmatprep.subr.bf16.mxu0 %v311
      %369 = vmatpush1.bf16.msra.mxu0 %v310
      %370 = vmatprep.subr.bf16.mxu0 0
      %371 = vmatpush2.bf16.msra.mxu0 0
      %372 = vmatprep.subr.bf16.mxu0 0
      %373 = vmatpush2.bf16.msra.mxu0 0
      %374 = vmatprep.subr.bf16.mxu0 0
      %375 = vmatpush2.bf16.msra.mxu0 0
      %376 = vmatprep.subr.bf16.mxu0 0
      %377 = vmatpush2.bf16.msra.mxu0 0
      %378 = vmatprep.subr.bf16.mxu0 0
      %379 = vmatpush2.bf16.msra.mxu0 0
      %380 = vmatprep.subr.bf16.mxu0 0
      %381 = vmatpush2.bf16.msra.mxu0 0
      %382 = vmatprep.subr.bf16.mxu0 0
      %383 = vmatpush2.bf16.msra.mxu0 0
      %384 = vmatprep.subr.bf16.mxu0 0
      %385 = vmatpush2.bf16.msra.mxu0 0
      %386 = vmatprep.mubr.bf16.mxu0 0
      %387 = vmatmul.mubr.bf16.gmra.mxu0 %v328
      %v388 = vpop.f32.mrf.mxu0
      %v389 = vadd.f32 %v269, %v388
      %v390 = vpop.f32.mrf.mxu0
      %v391 = vadd.f32 %v273, %v390
      %v392 = vpop.f32.mrf.mxu0
      %v393 = vadd.f32 %v269, %v392
      %v394 = vpop.f32.mrf.mxu0
      %v395 = vadd.f32 %v273, %v394
      %396 = vmatprep.mubr.bf16.mxu0 0
      %397 = vmatmul.mubr.bf16.gmra.mxu0 %v331
      %v398 = vpop.f32.mrf.mxu0
      %v399 = vadd.f32 %v269, %v398
      %v400 = vpop.f32.mrf.mxu0
      %v401 = vadd.f32 %v273, %v400
      %v402 = vpop.f32.mrf.mxu0
      %v403 = vadd.f32 %v269, %v402
      %v404 = vpop.f32.mrf.mxu0
      %v405 = vadd.f32 %v273, %v404
      %406 = vmatprep.mubr.bf16.mxu0 0
      %407 = vmatmul.mubr.bf16.gmra.mxu0 %v334
      %v408 = vpop.f32.mrf.mxu0
      %v409 = vadd.f32 %v269, %v408
      %v410 = vpop.f32.mrf.mxu0
      %v411 = vadd.f32 %v273, %v410
      %v412 = vpop.f32.mrf.mxu0
      %v413 = vadd.f32 %v269, %v412
      %v414 = vpop.f32.mrf.mxu0
      %v415 = vadd.f32 %v273, %v414
      %416 = vmatprep.mubr.bf16.mxu0 0
      %417 = vmatmul.mubr.bf16.gmra.mxu0 %v337
      %v418 = vpop.f32.mrf.mxu0
      %v419 = vadd.f32 %v269, %v418
      %v420 = vpop.f32.mrf.mxu0
      %v421 = vadd.f32 %v273, %v420
      %v422 = vpop.f32.mrf.mxu0
      %v423 = vadd.f32 %v269, %v422
      %v424 = vpop.f32.mrf.mxu0
      %v425 = vadd.f32 %v273, %v424
      %426 = vmatprep.mubr.bf16.mxu0 0
      %427 = vmatmul.mubr.bf16.gmra.mxu0 %v340
      %v428 = vpop.f32.mrf.mxu0
      %v429 = vadd.f32 %v269, %v428
      %v430 = vpop.f32.mrf.mxu0
      %v431 = vadd.f32 %v273, %v430
      %v432 = vpop.f32.mrf.mxu0
      %v433 = vadd.f32 %v269, %v432
      %v434 = vpop.f32.mrf.mxu0
      %v435 = vadd.f32 %v273, %v434
      %436 = vmatprep.mubr.bf16.mxu0 0
      %437 = vmatmul.mubr.bf16.gmra.mxu0 %v343
      %v438 = vpop.f32.mrf.mxu0
      %v439 = vadd.f32 %v269, %v438
      %v440 = vpop.f32.mrf.mxu0
      %v441 = vadd.f32 %v273, %v440
      %v442 = vpop.f32.mrf.mxu0
      %v443 = vadd.f32 %v269, %v442
      %v444 = vpop.f32.mrf.mxu0
      %v445 = vadd.f32 %v273, %v444
      %446 = vmatprep.mubr.bf16.mxu0 0
      %447 = vmatmul.mubr.bf16.gmra.mxu0 %v346
      %v448 = vpop.f32.mrf.mxu0
      %v449 = vadd.f32 %v269, %v448
      %v450 = vpop.f32.mrf.mxu0
      %v451 = vadd.f32 %v273, %v450
      %v452 = vpop.f32.mrf.mxu0
      %v453 = vadd.f32 %v269, %v452
      %v454 = vpop.f32.mrf.mxu0
      %v455 = vadd.f32 %v273, %v454
      %456 = vmatprep.mubr.bf16.mxu0 0
      %457 = vmatmul.mubr.bf16.gmra.mxu0 %v349
      %v458 = vpop.f32.mrf.mxu0
      %v459 = vadd.f32 %v269, %v458
      %v460 = vpop.f32.mrf.mxu0
      %v461 = vadd.f32 %v273, %v460
      %v462 = vpop.f32.mrf.mxu0
      %v463 = vadd.f32 %v269, %v462
      %v464 = vpop.f32.mrf.mxu0
      %v465 = vadd.f32 %v273, %v464
      %466 = vmatprep.mubr.bf16.mxu0 0
      %467 = vmatmul.mubr.bf16.gmra.mxu0 %v352
      %v468 = vpop.f32.mrf.mxu0
      %v469 = vadd.f32 %v269, %v468
      %v470 = vpop.f32.mrf.mxu0
      %v471 = vadd.f32 %v273, %v470
      %v472 = vpop.f32.mrf.mxu0
      %v473 = vadd.f32 %v269, %v472
      %v474 = vpop.f32.mrf.mxu0
      %v475 = vadd.f32 %v273, %v474
      %476 = vdwg.mxu0
      %477 = vmatprep.subr.bf16.mxu0 0
      %478 = vmatpush1.bf16.msra.mxu0 0
      %479 = vmatprep.subr.bf16.mxu0 0
      %480 = vmatpush1.bf16.msra.mxu0 0
      %481 = vmatprep.subr.bf16.mxu0 0
      %482 = vmatpush1.bf16.msra.mxu0 0
      %483 = vmatprep.subr.bf16.mxu0 0
      %484 = vmatpush1.bf16.msra.mxu0 0
      %485 = vmatprep.subr.bf16.mxu0 0
      %486 = vmatpush1.bf16.msra.mxu0 0
      %487 = vmatprep.subr.bf16.mxu0 0
      %488 = vmatpush1.bf16.msra.mxu0 0
      %489 = vmatprep.subr.bf16.mxu0 %v317
      %490 = vmatpush1.bf16.msra.mxu0 %v316
      %491 = vmatprep.subr.bf16.mxu0 %v313
      %492 = vmatpush1.bf16.msra.mxu0 %v312
      %493 = vmatprep.subr.bf16.mxu0 0
      %494 = vmatpush2.bf16.msra.mxu0 0
      %495 = vmatprep.subr.bf16.mxu0 0
      %496 = vmatpush2.bf16.msra.mxu0 0
      %497 = vmatprep.subr.bf16.mxu0 0
      %498 = vmatpush2.bf16.msra.mxu0 0
      %499 = vmatprep.subr.bf16.mxu0 0
      %500 = vmatpush2.bf16.msra.mxu0 0
      %501 = vmatprep.subr.bf16.mxu0 0
      %502 = vmatpush2.bf16.msra.mxu0 0
      %503 = vmatprep.subr.bf16.mxu0 0
      %504 = vmatpush2.bf16.msra.mxu0 0
      %505 = vmatprep.subr.bf16.mxu0 0
      %506 = vmatpush2.bf16.msra.mxu0 0
      %507 = vmatprep.subr.bf16.mxu0 0
      %508 = vmatpush2.bf16.msra.mxu0 0
      %509 = vmatprep.mubr.bf16.mxu0 0
      %510 = vmatmul.mubr.bf16.gmra.mxu0 %v328
      %v511 = vpop.f32.mrf.mxu0
      %v512 = vadd.f32 %v277, %v511
      %v513 = vpop.f32.mrf.mxu0
      %v514 = vadd.f32 %v281, %v513
      %v515 = vpop.f32.mrf.mxu0
      %v516 = vadd.f32 %v277, %v515
      %v517 = vpop.f32.mrf.mxu0
      %v518 = vadd.f32 %v281, %v517
      %519 = vmatprep.mubr.bf16.mxu0 0
      %520 = vmatmul.mubr.bf16.gmra.mxu0 %v331
      %v521 = vpop.f32.mrf.mxu0
      %v522 = vadd.f32 %v277, %v521
      %v523 = vpop.f32.mrf.mxu0
      %v524 = vadd.f32 %v281, %v523
      %v525 = vpop.f32.mrf.mxu0
      %v526 = vadd.f32 %v277, %v525
      %v527 = vpop.f32.mrf.mxu0
      %v528 = vadd.f32 %v281, %v527
      %529 = vmatprep.mubr.bf16.mxu0 0
      %530 = vmatmul.mubr.bf16.gmra.mxu0 %v334
      %v531 = vpop.f32.mrf.mxu0
      %v532 = vadd.f32 %v277, %v531
      %v533 = vpop.f32.mrf.mxu0
      %v534 = vadd.f32 %v281, %v533
      %v535 = vpop.f32.mrf.mxu0
      %v536 = vadd.f32 %v277, %v535
      %v537 = vpop.f32.mrf.mxu0
      %v538 = vadd.f32 %v281, %v537
      %539 = vmatprep.mubr.bf16.mxu0 0
      %540 = vmatmul.mubr.bf16.gmra.mxu0 %v337
      %v541 = vpop.f32.mrf.mxu0
      %v542 = vadd.f32 %v277, %v541
      %v543 = vpop.f32.mrf.mxu0
      %v544 = vadd.f32 %v281, %v543
      %v545 = vpop.f32.mrf.mxu0
      %v546 = vadd.f32 %v277, %v545
      %v547 = vpop.f32.mrf.mxu0
      %v548 = vadd.f32 %v281, %v547
      %549 = vmatprep.mubr.bf16.mxu0 0
      %550 = vmatmul.mubr.bf16.gmra.mxu0 %v340
      %v551 = vpop.f32.mrf.mxu0
      %v552 = vadd.f32 %v277, %v551
      %v553 = vpop.f32.mrf.mxu0
      %v554 = vadd.f32 %v281, %v553
      %v555 = vpop.f32.mrf.mxu0
      %v556 = vadd.f32 %v277, %v555
      %v557 = vpop.f32.mrf.mxu0
      %v558 = vadd.f32 %v281, %v557
      %559 = vmatprep.mubr.bf16.mxu0 0
      %560 = vmatmul.mubr.bf16.gmra.mxu0 %v343
      %v561 = vpop.f32.mrf.mxu0
      %v562 = vadd.f32 %v277, %v561
      %v563 = vpop.f32.mrf.mxu0
      %v564 = vadd.f32 %v281, %v563
      %v565 = vpop.f32.mrf.mxu0
      %v566 = vadd.f32 %v277, %v565
      %v567 = vpop.f32.mrf.mxu0
      %v568 = vadd.f32 %v281, %v567
      %569 = vmatprep.mubr.bf16.mxu0 0
      %570 = vmatmul.mubr.bf16.gmra.mxu0 %v346
      %v571 = vpop.f32.mrf.mxu0
      %v572 = vadd.f32 %v277, %v571
      %v573 = vpop.f32.mrf.mxu0
      %v574 = vadd.f32 %v281, %v573
      %v575 = vpop.f32.mrf.mxu0
      %v576 = vadd.f32 %v277, %v575
      %v577 = vpop.f32.mrf.mxu0
      %v578 = vadd.f32 %v281, %v577
      %579 = vmatprep.mubr.bf16.mxu0 0
      %580 = vmatmul.mubr.bf16.gmra.mxu0 %v349
      %v581 = vpop.f32.mrf.mxu0
      %v582 = vadd.f32 %v277, %v581
      %v583 = vpop.f32.mrf.mxu0
      %v584 = vadd.f32 %v281, %v583
      %v585 = vpop.f32.mrf.mxu0
      %v586 = vadd.f32 %v277, %v585
      %v587 = vpop.f32.mrf.mxu0
      %v588 = vadd.f32 %v281, %v587
      %589 = vmatprep.mubr.bf16.mxu0 0
      %590 = vmatmul.mubr.bf16.gmra.mxu0 %v352
      %v591 = vpop.f32.mrf.mxu0
      %v592 = vadd.f32 %v277, %v591
      %v593 = vpop.f32.mrf.mxu0
      %v594 = vadd.f32 %v281, %v593
      %v595 = vpop.f32.mrf.mxu0
      %v596 = vadd.f32 %v277, %v595
      %v597 = vpop.f32.mrf.mxu0
      %v598 = vadd.f32 %v281, %v597
      %599 = vdwg.mxu0
      %v600 = vmax.f32 %v389, 0.0
      %v601 = vmax.f32 %v391, 0.0
      %v602 = vmax.f32 %v512, 0.0
      %v603 = vmax.f32 %v514, 0.0
      %v604 = vmax.f32 %v393, 0.0
      %v605 = vmax.f32 %v395, 0.0
      %v606 = vmax.f32 %v516, 0.0
      %v607 = vmax.f32 %v518, 0.0
      %v608 = vmax.f32 %v399, 0.0
      %v609 = vmax.f32 %v401, 0.0
      %v610 = vmax.f32 %v522, 0.0
      %v611 = vmax.f32 %v524, 0.0
      %v612 = vmax.f32 %v403, 0.0
      %v613 = vmax.f32 %v405, 0.0
      %v614 = vmax.f32 %v526, 0.0
      %v615 = vmax.f32 %v528, 0.0
      %v616 = vmax.f32 %v409, 0.0
      %v617 = vmax.f32 %v411, 0.0
      %v618 = vmax.f32 %v532, 0.0
      %v619 = vmax.f32 %v534, 0.0
      %v620 = vmax.f32 %v413, 0.0
      %v621 = vmax.f32 %v415, 0.0
      %v622 = vmax.f32 %v536, 0.0
      %v623 = vmax.f32 %v538, 0.0
      %v624 = vmax.f32 %v419, 0.0
      %v625 = vmax.f32 %v421, 0.0
      %v626 = vmax.f32 %v542, 0.0
      %v627 = vmax.f32 %v544, 0.0
      %v628 = vmax.f32 %v423, 0.0
      %v629 = vmax.f32 %v425, 0.0
      %v630 = vmax.f32 %v546, 0.0
      %v631 = vmax.f32 %v548, 0.0
      %v632 = vmax.f32 %v429, 0.0
      %v633 = vmax.f32 %v431, 0.0
      %v634 = vmax.f32 %v552, 0.0
      %v635 = vmax.f32 %v554, 0.0
      %v636 = vmax.f32 %v433, 0.0
      %v637 = vmax.f32 %v435, 0.0
      %v638 = vmax.f32 %v556, 0.0
      %v639 = vmax.f32 %v558, 0.0
      %v640 = vmax.f32 %v439, 0.0
      %v641 = vmax.f32 %v441, 0.0
      %v642 = vmax.f32 %v562, 0.0
      %v643 = vmax.f32 %v564, 0.0
      %v644 = vmax.f32 %v443, 0.0
      %v645 = vmax.f32 %v445, 0.0
      %v646 = vmax.f32 %v566, 0.0
      %v647 = vmax.f32 %v568, 0.0
      %v648 = vmax.f32 %v449, 0.0
      %v649 = vmax.f32 %v451, 0.0
      %v650 = vmax.f32 %v572, 0.0
      %v651 = vmax.f32 %v574, 0.0
      %v652 = vmax.f32 %v453, 0.0
      %v653 = vmax.f32 %v455, 0.0
      %v654 = vmax.f32 %v576, 0.0
      %v655 = vmax.f32 %v578, 0.0
      %v656 = vmax.f32 %v459, 0.0
      %v657 = vmax.f32 %v461, 0.0
      %v658 = vmax.f32 %v582, 0.0
      %v659 = vmax.f32 %v584, 0.0
      %v660 = vmax.f32 %v463, 0.0
      %v661 = vmax.f32 %v465, 0.0
      %v662 = vmax.f32 %v586, 0.0
      %v663 = vmax.f32 %v588, 0.0
      %v664 = vmax.f32 %v469, 0.0
      %v665 = vmax.f32 %v471, 0.0
      %v666 = vmax.f32 %v592, 0.0
      %v667 = vmax.f32 %v594, 0.0
      %v668 = vmax.f32 %v473, 0.0
      %v669 = vmax.f32 %v475, 0.0
      %v670 = vmax.f32 %v596, 0.0
      %v671 = vmax.f32 %v598, 0.0
      %v672 = vpack.c.bf16 %v604, %v600
      %v673 = vpack.c.bf16 %v605, %v601
      %v674 = vpack.c.bf16 %v606, %v602
      %v675 = vpack.c.bf16 %v607, %v603
      %v676 = vpack.c.bf16 %v612, %v608
      %v677 = vpack.c.bf16 %v613, %v609
      %v678 = vpack.c.bf16 %v614, %v610
      %v679 = vpack.c.bf16 %v615, %v611
      %v680 = vpack.c.bf16 %v620, %v616
      %v681 = vpack.c.bf16 %v621, %v617
      %v682 = vpack.c.bf16 %v622, %v618
      %v683 = vpack.c.bf16 %v623, %v619
      %v684 = vpack.c.bf16 %v628, %v624
      %v685 = vpack.c.bf16 %v629, %v625
      %v686 = vpack.c.bf16 %v630, %v626
      %v687 = vpack.c.bf16 %v631, %v627
      %v688 = vpack.c.bf16 %v636, %v632
      %v689 = vpack.c.bf16 %v637, %v633
      %v690 = vpack.c.bf16 %v638, %v634
      %v691 = vpack.c.bf16 %v639, %v635
      %v692 = vpack.c.bf16 %v644, %v640
      %v693 = vpack.c.bf16 %v645, %v641
      %v694 = vpack.c.bf16 %v646, %v642
      %v695 = vpack.c.bf16 %v647, %v643
      %v696 = vpack.c.bf16 %v652, %v648
      %v697 = vpack.c.bf16 %v653, %v649
      %v698 = vpack.c.bf16 %v654, %v650
      %v699 = vpack.c.bf16 %v655, %v651
      %v700 = vpack.c.bf16 %v660, %v656
      %v701 = vpack.c.bf16 %v661, %v657
      %v702 = vpack.c.bf16 %v662, %v658
      %v703 = vpack.c.bf16 %v663, %v659
      %v704 = vpack.c.bf16 %v668, %v664
      %v705 = vpack.c.bf16 %v669, %v665
      %v706 = vpack.c.bf16 %v670, %v666
      %v707 = vpack.c.bf16 %v671, %v667
      %v708 = vld [vmem:[%s3] sm:$0xf]
      %v709 = vld [vmem:[%s3 + $0x4] sm:$0xf]
      %v710 = vld [vmem:[%s3 + $0x8] sm:$0xf]
      %v711 = vld [vmem:[%s3 + $0xc] sm:$0xf]
      %v712 = vld [vmem:[%s3 + $0x10] sm:$0xf]
      %v713 = vld [vmem:[%s3 + $0x14] sm:$0xf]
      %v714 = vld [vmem:[%s3 + $0x18] sm:$0xf]
      %v715 = vld [vmem:[%s3 + $0x1c] sm:$0xf]
      %v716 = vld [vmem:[%s3 + $0x20] sm:$0xf]
      %v717 = vld [vmem:[%s3 + $0x24] sm:$0xf]
      %v718 = vld [vmem:[%s3 + $0x28] sm:$0xf]
      %v719 = vld [vmem:[%s3 + $0x2c] sm:$0xf]
      %v720 = vld [vmem:[%s3 + $0x30] sm:$0xf]
      %v721 = vld [vmem:[%s3 + $0x34] sm:$0xf]
      %v722 = vld [vmem:[%s3 + $0x38] sm:$0xf]
      %v723 = vld [vmem:[%s3 + $0x3c] sm:$0xf]
      %v724 = vld [vmem:[%s3 + $0x40] sm:$0xf]
      %v725 = vld [vmem:[%s3 + $0x44] sm:$0xf]
      %v726 = vld [vmem:[%s3 + $0x48] sm:$0xf]
      %v727 = vld [vmem:[%s3 + $0x4c] sm:$0xf]
      %v728 = vld [vmem:[%s3 + $0x50] sm:$0xf]
      %v729 = vld [vmem:[%s3 + $0x54] sm:$0xf]
      %v730 = vld [vmem:[%s3 + $0x58] sm:$0xf]
      %v731 = vld [vmem:[%s3 + $0x5c] sm:$0xf]
      %v732 = vld [vmem:[%s3 + $0x60] sm:$0xf]
      %v733 = vld [vmem:[%s3 + $0x64] sm:$0xf]
      %v734 = vld [vmem:[%s3 + $0x68] sm:$0xf]
      %v735 = vld [vmem:[%s3 + $0x6c] sm:$0xf]
      %v736 = vld [vmem:[%s3 + $0x70] sm:$0xf]
      %v737 = vld [vmem:[%s3 + $0x74] sm:$0xf]
      %v738 = vld [vmem:[%s3 + $0x78] sm:$0xf]
      %v739 = vld [vmem:[%s3 + $0x7c] sm:$0xf]
      %v740 = vld [vmem:[%s3 + $0x80] sm:$0xf]
      %v741 = vld [vmem:[%s3 + $0x84] sm:$0xf]
      %v742 = vld [vmem:[%s3 + $0x88] sm:$0xf]
      %v743 = vld [vmem:[%s3 + $0x8c] sm:$0xf]
      %v744 = vld [vmem:[%s3 + $0x90] sm:$0xf]
      %v745 = vld [vmem:[%s3 + $0x94] sm:$0xf]
      %v746 = vld [vmem:[%s3 + $0x98] sm:$0xf]
      %v747 = vld [vmem:[%s3 + $0x9c] sm:$0xf]
      %v748 = vld [vmem:[%s3 + $0xa0] sm:$0xf]
      %v749 = vld [vmem:[%s3 + $0xa4] sm:$0xf]
      %v750 = vld [vmem:[%s3 + $0xa8] sm:$0xf]
      %v751 = vld [vmem:[%s3 + $0xac] sm:$0xf]
      %v752 = vld [vmem:[%s3 + $0xb0] sm:$0xf]
      %v753 = vld [vmem:[%s3 + $0xb4] sm:$0xf]
      %v754 = vld [vmem:[%s3 + $0xb8] sm:$0xf]
      %v755 = vld [vmem:[%s3 + $0xbc] sm:$0xf]
      %v756 = vld [vmem:[%s3 + $0xc0] sm:$0xf]
      %v757 = vld [vmem:[%s3 + $0xc4] sm:$0xf]
      %v758 = vld [vmem:[%s3 + $0xc8] sm:$0xf]
      %v759 = vld [vmem:[%s3 + $0xcc] sm:$0xf]
      %v760 = vld [vmem:[%s3 + $0xd0] sm:$0xf]
      %v761 = vld [vmem:[%s3 + $0xd4] sm:$0xf]
      %v762 = vld [vmem:[%s3 + $0xd8] sm:$0xf]
      %v763 = vld [vmem:[%s3 + $0xdc] sm:$0xf]
      %v764 = vld [vmem:[%s3 + $0xe0] sm:$0xf]
      %v765 = vld [vmem:[%s3 + $0xe4] sm:$0xf]
      %v766 = vld [vmem:[%s3 + $0xe8] sm:$0xf]
      %v767 = vld [vmem:[%s3 + $0xec] sm:$0xf]
      %v768 = vld [vmem:[%s3 + $0xf0] sm:$0xf]
      %v769 = vld [vmem:[%s3 + $0xf4] sm:$0xf]
      %v770 = vld [vmem:[%s3 + $0xf8] sm:$0xf]
      %v771 = vld [vmem:[%s3 + $0xfc] sm:$0xf]
      %v772 = vld [vmem:[%s4] sm:$0x1]
      %v774 = vlaneseq
      %v775 = vshrl.u32 %v774, 7
      %v776 = vsub.s32 0, %v775
      %v777 = vrot.slane %v772, %v776
      %v843 = vunpack.c.l.b16 %v708
      %v844 = vunpack.c.l.b16 %v709
      %v845 = vunpack.c.l.b16 %v710
      %v846 = vunpack.c.l.b16 %v711
      %v847 = vunpack.c.l.b16 %v712
      %v848 = vunpack.c.l.b16 %v713
      %v849 = vunpack.c.l.b16 %v714
      %v850 = vunpack.c.l.b16 %v715
      %v851 = vunpack.c.l.b16 %v716
      %v852 = vunpack.c.l.b16 %v717
      %v853 = vunpack.c.l.b16 %v718
      %v854 = vunpack.c.l.b16 %v719
      %v855 = vunpack.c.l.b16 %v720
      %v856 = vunpack.c.l.b16 %v721
      %v857 = vunpack.c.l.b16 %v722
      %v858 = vunpack.c.l.b16 %v723
      %v859 = vunpack.c.l.b16 %v724
      %v860 = vunpack.c.l.b16 %v725
      %v861 = vunpack.c.l.b16 %v726
      %v862 = vunpack.c.l.b16 %v727
      %v863 = vunpack.c.l.b16 %v728
      %v864 = vunpack.c.l.b16 %v729
      %v865 = vunpack.c.l.b16 %v730
      %v866 = vunpack.c.l.b16 %v731
      %v867 = vunpack.c.l.b16 %v732
      %v868 = vunpack.c.l.b16 %v733
      %v869 = vunpack.c.l.b16 %v734
      %v870 = vunpack.c.l.b16 %v735
      %v871 = vunpack.c.l.b16 %v736
      %v872 = vunpack.c.l.b16 %v737
      %v873 = vunpack.c.l.b16 %v738
      %v874 = vunpack.c.l.b16 %v739
      %v875 = vunpack.c.l.b16 %v740
      %v876 = vunpack.c.l.b16 %v741
      %v877 = vunpack.c.l.b16 %v742
      %v878 = vunpack.c.l.b16 %v743
      %v879 = vunpack.c.l.b16 %v744
      %v880 = vunpack.c.l.b16 %v745
      %v881 = vunpack.c.l.b16 %v746
      %v882 = vunpack.c.l.b16 %v747
      %v883 = vunpack.c.l.b16 %v748
      %v884 = vunpack.c.l.b16 %v749
      %v885 = vunpack.c.l.b16 %v750
      %v886 = vunpack.c.l.b16 %v751
      %v887 = vunpack.c.l.b16 %v752
      %v888 = vunpack.c.l.b16 %v753
      %v889 = vunpack.c.l.b16 %v754
      %v890 = vunpack.c.l.b16 %v755
      %v891 = vunpack.c.l.b16 %v756
      %v892 = vunpack.c.l.b16 %v757
      %v893 = vunpack.c.l.b16 %v758
      %v894 = vunpack.c.l.b16 %v759
      %v895 = vunpack.c.l.b16 %v760
      %v896 = vunpack.c.l.b16 %v761
      %v897 = vunpack.c.l.b16 %v762
      %v898 = vunpack.c.l.b16 %v763
      %v899 = vunpack.c.l.b16 %v764
      %v900 = vunpack.c.l.b16 %v765
      %v901 = vunpack.c.l.b16 %v766
      %v902 = vunpack.c.l.b16 %v767
      %v903 = vunpack.c.l.b16 %v768
      %v904 = vunpack.c.l.b16 %v769
      %v905 = vunpack.c.l.b16 %v770
      %v906 = vunpack.c.l.b16 %v771
      %v907 = vpack.c.b16 %v844, %v843
      %v908 = vpack.c.b16 %v846, %v845
      %v909 = vpack.c.b16 %v848, %v847
      %v910 = vpack.c.b16 %v850, %v849
      %v911 = vpack.c.b16 %v852, %v851
      %v912 = vpack.c.b16 %v854, %v853
      %v913 = vpack.c.b16 %v856, %v855
      %v914 = vpack.c.b16 %v858, %v857
      %v915 = vpack.c.b16 %v860, %v859
      %v916 = vpack.c.b16 %v862, %v861
      %v917 = vpack.c.b16 %v864, %v863
      %v918 = vpack.c.b16 %v866, %v865
      %v919 = vpack.c.b16 %v868, %v867
      %v920 = vpack.c.b16 %v870, %v869
      %v921 = vpack.c.b16 %v872, %v871
      %v922 = vpack.c.b16 %v874, %v873
      %v923 = vpack.c.b16 %v876, %v875
      %v924 = vpack.c.b16 %v878, %v877
      %v925 = vpack.c.b16 %v880, %v879
      %v926 = vpack.c.b16 %v882, %v881
      %v927 = vpack.c.b16 %v884, %v883
      %v928 = vpack.c.b16 %v886, %v885
      %v929 = vpack.c.b16 %v888, %v887
      %v930 = vpack.c.b16 %v890, %v889
      %v931 = vpack.c.b16 %v892, %v891
      %v932 = vpack.c.b16 %v894, %v893
      %v933 = vpack.c.b16 %v896, %v895
      %v934 = vpack.c.b16 %v898, %v897
      %v935 = vpack.c.b16 %v900, %v899
      %v936 = vpack.c.b16 %v902, %v901
      %v937 = vpack.c.b16 %v904, %v903
      %v938 = vpack.c.b16 %v906, %v905
      %971 = vmatprep.subr.bf16.mxu0 0
      %972 = vmatpush1.bf16.msra.mxu0 %v914
      %973 = vmatprep.subr.bf16.mxu0 0
      %974 = vmatpush1.bf16.msra.mxu0 %v913
      %975 = vmatprep.subr.bf16.mxu0 0
      %976 = vmatpush1.bf16.msra.mxu0 %v912
      %977 = vmatprep.subr.bf16.mxu0 0
      %978 = vmatpush1.bf16.msra.mxu0 %v911
      %979 = vmatprep.subr.bf16.mxu0 0
      %980 = vmatpush1.bf16.msra.mxu0 %v910
      %981 = vmatprep.subr.bf16.mxu0 0
      %982 = vmatpush1.bf16.msra.mxu0 %v909
      %983 = vmatprep.subr.bf16.mxu0 0
      %984 = vmatpush1.bf16.msra.mxu0 %v908
      %985 = vmatprep.subr.bf16.mxu0 0
      %986 = vmatpush1.bf16.msra.mxu0 %v907
      %987 = vmatprep.subr.bf16.mxu0 0
      %988 = vmatpush2.bf16.msra.mxu0 %v922
      %989 = vmatprep.subr.bf16.mxu0 0
      %990 = vmatpush2.bf16.msra.mxu0 %v921
      %991 = vmatprep.subr.bf16.mxu0 0
      %992 = vmatpush2.bf16.msra.mxu0 %v920
      %993 = vmatprep.subr.bf16.mxu0 0
      %994 = vmatpush2.bf16.msra.mxu0 %v919
      %995 = vmatprep.subr.bf16.mxu0 0
      %996 = vmatpush2.bf16.msra.mxu0 %v918
      %997 = vmatprep.subr.bf16.mxu0 0
      %998 = vmatpush2.bf16.msra.mxu0 %v917
      %999 = vmatprep.subr.bf16.mxu0 0
      %1000 = vmatpush2.bf16.msra.mxu0 %v916
      %1001 = vmatprep.subr.bf16.mxu0 0
      %1002 = vmatpush2.bf16.msra.mxu0 %v915
      %1003 = vmatprep.mubr.bf16.mxu0 %v673
      %1004 = vmatmul.mubr.bf16.gmra.mxu0 %v672
      %v1005 = vpop.f32.mrf.mxu0
      %v1006 = vadd.f32 %v777, %v1005
      %v1007 = vpop.f32.mrf.mxu0
      %v1008 = vpop.f32.mrf.mxu0
      %v1009 = vadd.f32 %v777, %v1008
      %v1010 = vpop.f32.mrf.mxu0
      %1011 = vmatprep.mubr.bf16.mxu0 %v677
      %1012 = vmatmul.mubr.bf16.gmra.mxu0 %v676
      %v1013 = vpop.f32.mrf.mxu0
      %v1014 = vadd.f32 %v777, %v1013
      %v1015 = vpop.f32.mrf.mxu0
      %v1016 = vpop.f32.mrf.mxu0
      %v1017 = vadd.f32 %v777, %v1016
      %v1018 = vpop.f32.mrf.mxu0
      %1019 = vmatprep.mubr.bf16.mxu0 %v681
      %1020 = vmatmul.mubr.bf16.gmra.mxu0 %v680
      %v1021 = vpop.f32.mrf.mxu0
      %v1022 = vadd.f32 %v777, %v1021
      %v1023 = vpop.f32.mrf.mxu0
      %v1024 = vpop.f32.mrf.mxu0
      %v1025 = vadd.f32 %v777, %v1024
      %v1026 = vpop.f32.mrf.mxu0
      %1027 = vmatprep.mubr.bf16.mxu0 %v685
      %1028 = vmatmul.mubr.bf16.gmra.mxu0 %v684
      %v1029 = vpop.f32.mrf.mxu0
      %v1030 = vadd.f32 %v777, %v1029
      %v1031 = vpop.f32.mrf.mxu0
      %v1032 = vpop.f32.mrf.mxu0
      %v1033 = vadd.f32 %v777, %v1032
      %v1034 = vpop.f32.mrf.mxu0
      %1035 = vmatprep.mubr.bf16.mxu0 %v689
      %1036 = vmatmul.mubr.bf16.gmra.mxu0 %v688
      %v1037 = vpop.f32.mrf.mxu0
      %v1038 = vadd.f32 %v777, %v1037
      %v1039 = vpop.f32.mrf.mxu0
      %v1040 = vpop.f32.mrf.mxu0
      %v1041 = vadd.f32 %v777, %v1040
      %v1042 = vpop.f32.mrf.mxu0
      %1043 = vmatprep.mubr.bf16.mxu0 %v693
      %1044 = vmatmul.mubr.bf16.gmra.mxu0 %v692
      %v1045 = vpop.f32.mrf.mxu0
      %v1046 = vadd.f32 %v777, %v1045
      %v1047 = vpop.f32.mrf.mxu0
      %v1048 = vpop.f32.mrf.mxu0
      %v1049 = vadd.f32 %v777, %v1048
      %v1050 = vpop.f32.mrf.mxu0
      %1051 = vmatprep.mubr.bf16.mxu0 %v697
      %1052 = vmatmul.mubr.bf16.gmra.mxu0 %v696
      %v1053 = vpop.f32.mrf.mxu0
      %v1054 = vadd.f32 %v777, %v1053
      %v1055 = vpop.f32.mrf.mxu0
      %v1056 = vpop.f32.mrf.mxu0
      %v1057 = vadd.f32 %v777, %v1056
      %v1058 = vpop.f32.mrf.mxu0
      %1059 = vmatprep.mubr.bf16.mxu0 %v701
      %1060 = vmatmul.mubr.bf16.gmra.mxu0 %v700
      %v1061 = vpop.f32.mrf.mxu0
      %v1062 = vadd.f32 %v777, %v1061
      %v1063 = vpop.f32.mrf.mxu0
      %v1064 = vpop.f32.mrf.mxu0
      %v1065 = vadd.f32 %v777, %v1064
      %v1066 = vpop.f32.mrf.mxu0
      %1067 = vmatprep.mubr.bf16.mxu0 %v705
      %1068 = vmatmul.mubr.bf16.gmra.mxu0 %v704
      %v1069 = vpop.f32.mrf.mxu0
      %v1070 = vadd.f32 %v777, %v1069
      %v1071 = vpop.f32.mrf.mxu0
      %v1072 = vpop.f32.mrf.mxu0
      %v1073 = vadd.f32 %v777, %v1072
      %v1074 = vpop.f32.mrf.mxu0
      %1075 = vdwg.mxu0
      %1076 = vmatprep.subr.bf16.mxu0 0
      %1077 = vmatpush1.bf16.msra.mxu0 %v930
      %1078 = vmatprep.subr.bf16.mxu0 0
      %1079 = vmatpush1.bf16.msra.mxu0 %v929
      %1080 = vmatprep.subr.bf16.mxu0 0
      %1081 = vmatpush1.bf16.msra.mxu0 %v928
      %1082 = vmatprep.subr.bf16.mxu0 0
      %1083 = vmatpush1.bf16.msra.mxu0 %v927
      %1084 = vmatprep.subr.bf16.mxu0 0
      %1085 = vmatpush1.bf16.msra.mxu0 %v926
      %1086 = vmatprep.subr.bf16.mxu0 0
      %1087 = vmatpush1.bf16.msra.mxu0 %v925
      %1088 = vmatprep.subr.bf16.mxu0 0
      %1089 = vmatpush1.bf16.msra.mxu0 %v924
      %1090 = vmatprep.subr.bf16.mxu0 0
      %1091 = vmatpush1.bf16.msra.mxu0 %v923
      %1092 = vmatprep.subr.bf16.mxu0 0
      %1093 = vmatpush2.bf16.msra.mxu0 %v938
      %1094 = vmatprep.subr.bf16.mxu0 0
      %1095 = vmatpush2.bf16.msra.mxu0 %v937
      %1096 = vmatprep.subr.bf16.mxu0 0
      %1097 = vmatpush2.bf16.msra.mxu0 %v936
      %1098 = vmatprep.subr.bf16.mxu0 0
      %1099 = vmatpush2.bf16.msra.mxu0 %v935
      %1100 = vmatprep.subr.bf16.mxu0 0
      %1101 = vmatpush2.bf16.msra.mxu0 %v934
      %1102 = vmatprep.subr.bf16.mxu0 0
      %1103 = vmatpush2.bf16.msra.mxu0 %v933
      %1104 = vmatprep.subr.bf16.mxu0 0
      %1105 = vmatpush2.bf16.msra.mxu0 %v932
      %1106 = vmatprep.subr.bf16.mxu0 0
      %1107 = vmatpush2.bf16.msra.mxu0 %v931
      %1108 = vmatprep.mubr.bf16.mxu0 %v675
      %1109 = vmatmul.mubr.bf16.gmra.mxu0 %v674
      %v1110 = vpop.f32.mrf.mxu0
      %v1111 = vadd.f32 %v1006, %v1110
      %v1112 = vpop.f32.mrf.mxu0
      %v1113 = vpop.f32.mrf.mxu0
      %v1114 = vadd.f32 %v1009, %v1113
      %v1115 = vpop.f32.mrf.mxu0
      %1116 = vmatprep.mubr.bf16.mxu0 %v679
      %1117 = vmatmul.mubr.bf16.gmra.mxu0 %v678
      %v1118 = vpop.f32.mrf.mxu0
      %v1119 = vadd.f32 %v1014, %v1118
      %v1120 = vpop.f32.mrf.mxu0
      %v1121 = vpop.f32.mrf.mxu0
      %v1122 = vadd.f32 %v1017, %v1121
      %v1123 = vpop.f32.mrf.mxu0
      %1124 = vmatprep.mubr.bf16.mxu0 %v683
      %1125 = vmatmul.mubr.bf16.gmra.mxu0 %v682
      %v1126 = vpop.f32.mrf.mxu0
      %v1127 = vadd.f32 %v1022, %v1126
      %v1128 = vpop.f32.mrf.mxu0
      %v1129 = vpop.f32.mrf.mxu0
      %v1130 = vadd.f32 %v1025, %v1129
      %v1131 = vpop.f32.mrf.mxu0
      %1132 = vmatprep.mubr.bf16.mxu0 %v687
      %1133 = vmatmul.mubr.bf16.gmra.mxu0 %v686
      %v1134 = vpop.f32.mrf.mxu0
      %v1135 = vadd.f32 %v1030, %v1134
      %v1136 = vpop.f32.mrf.mxu0
      %v1137 = vpop.f32.mrf.mxu0
      %v1138 = vadd.f32 %v1033, %v1137
      %v1139 = vpop.f32.mrf.mxu0
      %1140 = vmatprep.mubr.bf16.mxu0 %v691
      %1141 = vmatmul.mubr.bf16.gmra.mxu0 %v690
      %v1142 = vpop.f32.mrf.mxu0
      %v1143 = vadd.f32 %v1038, %v1142
      %v1144 = vpop.f32.mrf.mxu0
      %v1145 = vpop.f32.mrf.mxu0
      %v1146 = vadd.f32 %v1041, %v1145
      %v1147 = vpop.f32.mrf.mxu0
      %1148 = vmatprep.mubr.bf16.mxu0 %v695
      %1149 = vmatmul.mubr.bf16.gmra.mxu0 %v694
      %v1150 = vpop.f32.mrf.mxu0
      %v1151 = vadd.f32 %v1046, %v1150
      %v1152 = vpop.f32.mrf.mxu0
      %v1153 = vpop.f32.mrf.mxu0
      %v1154 = vadd.f32 %v1049, %v1153
      %v1155 = vpop.f32.mrf.mxu0
      %1156 = vmatprep.mubr.bf16.mxu0 %v699
      %1157 = vmatmul.mubr.bf16.gmra.mxu0 %v698
      %v1158 = vpop.f32.mrf.mxu0
      %v1159 = vadd.f32 %v1054, %v1158
      %v1160 = vpop.f32.mrf.mxu0
      %v1161 = vpop.f32.mrf.mxu0
      %v1162 = vadd.f32 %v1057, %v1161
      %v1163 = vpop.f32.mrf.mxu0
      %1164 = vmatprep.mubr.bf16.mxu0 %v703
      %1165 = vmatmul.mubr.bf16.gmra.mxu0 %v702
      %v1166 = vpop.f32.mrf.mxu0
      %v1167 = vadd.f32 %v1062, %v1166
      %v1168 = vpop.f32.mrf.mxu0
      %v1169 = vpop.f32.mrf.mxu0
      %v1170 = vadd.f32 %v1065, %v1169
      %v1171 = vpop.f32.mrf.mxu0
      %1172 = vmatprep.mubr.bf16.mxu0 %v707
      %1173 = vmatmul.mubr.bf16.gmra.mxu0 %v706
      %v1174 = vpop.f32.mrf.mxu0
      %v1175 = vadd.f32 %v1070, %v1174
      %v1176 = vpop.f32.mrf.mxu0
      %v1177 = vpop.f32.mrf.mxu0
      %v1178 = vadd.f32 %v1073, %v1177
      %v1179 = vpop.f32.mrf.mxu0
      %1180 = vdwg.mxu0
      %v1181 = vmax.f32 %v1111, 0.0
      %v1182 = vmax.f32 %v1114, 0.0
      %v1183 = vmax.f32 %v1119, 0.0
      %v1184 = vmax.f32 %v1122, 0.0
      %v1185 = vmax.f32 %v1127, 0.0
      %v1186 = vmax.f32 %v1130, 0.0
      %v1187 = vmax.f32 %v1135, 0.0
      %v1188 = vmax.f32 %v1138, 0.0
      %v1189 = vmax.f32 %v1143, 0.0
      %v1190 = vmax.f32 %v1146, 0.0
      %v1191 = vmax.f32 %v1151, 0.0
      %v1192 = vmax.f32 %v1154, 0.0
      %v1193 = vmax.f32 %v1159, 0.0
      %v1194 = vmax.f32 %v1162, 0.0
      %v1195 = vmax.f32 %v1167, 0.0
      %v1196 = vmax.f32 %v1170, 0.0
      %v1197 = vmax.f32 %v1175, 0.0
      %v1198 = vmax.f32 %v1178, 0.0
      %vm1199 = vcmask 130048
      %1200 = vst.msk [vmem:[%s226] sm:$0xff] %vm1199, %v1181
      %1201 = vst.msk [vmem:[%s226 + $0x8] sm:$0xff] %vm1199, %v1182
      %1202 = vst.msk [vmem:[%s226 + $0x10] sm:$0xff] %vm1199, %v1183
      %1203 = vst.msk [vmem:[%s226 + $0x18] sm:$0xff] %vm1199, %v1184
      %1204 = vst.msk [vmem:[%s226 + $0x20] sm:$0xff] %vm1199, %v1185
      %1205 = vst.msk [vmem:[%s226 + $0x28] sm:$0xff] %vm1199, %v1186
      %1206 = vst.msk [vmem:[%s226 + $0x30] sm:$0xff] %vm1199, %v1187
      %1207 = vst.msk [vmem:[%s226 + $0x38] sm:$0xff] %vm1199, %v1188
      %1208 = vst.msk [vmem:[%s226 + $0x40] sm:$0xff] %vm1199, %v1189
      %1209 = vst.msk [vmem:[%s226 + $0x48] sm:$0xff] %vm1199, %v1190
      %1210 = vst.msk [vmem:[%s226 + $0x50] sm:$0xff] %vm1199, %v1191
      %1211 = vst.msk [vmem:[%s226 + $0x58] sm:$0xff] %vm1199, %v1192
      %1212 = vst.msk [vmem:[%s226 + $0x60] sm:$0xff] %vm1199, %v1193
      %1213 = vst.msk [vmem:[%s226 + $0x68] sm:$0xff] %vm1199, %v1194
      %1214 = vst.msk [vmem:[%s226 + $0x70] sm:$0xff] %vm1199, %v1195
      %1215 = vst.msk [vmem:[%s226 + $0x78] sm:$0xff] %vm1199, %v1196
      %1216 = vst.msk [vmem:[%s226 + $0x80] sm:$0xff] %vm1199, %v1197
      %1217 = vst.msk [vmem:[%s226 + $0x88] sm:$0xff] %vm1199, %v1198
      %s1218 = smul.u32 18, %s16
      %p1219 = scmp.lt.s32.totalorder %s1218, 35
      %s1220 = scalar_select %p1219, %s1218, 35
      %s1221 = smul.addr %s1220, 8
      %s1222 = scalar_lea.vmem %s5, %s1221
      // Predicated region
      $region41: #{tpu_custom_call.1} parent=39 // pred_check
        %p1223 = pneg %p144
      $region42: #{tpu_custom_call.1} parent=39 // pred_check_branch
        %1225 = sbr.rel (%p1223) target = $region44
      $region43: #{tpu_custom_call.1} parent=39 // pred_region
        %s1226 = smul.u32 18, %s16
      $region44: #{tpu_custom_call.1} parent=39 // pred_fallthru
        _
    $region40: #{tpu_custom_call.1} parent=5 // pred_fallthru
      _
    %p1227 = scmp.le.s32.totalorder 2, %s11
    // Predicated region
    $region45: #{tpu_custom_call.1} parent=5 // pred_check
      %p1228 = pneg %p1227
    $region46: #{tpu_custom_call.1} parent=5 // pred_check_branch
      %1230 = sbr.rel (%p1228) target = $region48
    $region47: #{tpu_custom_call.1} parent=5 // pred_region
      %s1231 = ssub.s32 %s11, 2
      // Predicated region
      $region49: #{tpu_custom_call.1} parent=47 // pred_check
        %p1232 = pneg %p150
      $region50: #{tpu_custom_call.1} parent=47 // pred_check_branch
        %1234 = sbr.rel (%p1232) target = $region52
      $region51: #{tpu_custom_call.1} parent=47 // pred_region
        %s1235 = smul.u32 18, %s17
        %p1236 = scmp.lt.s32.totalorder %s1235, 35
        %s1237 = scalar_select %p1236, %s1235, 35
        %s1238 = smul.addr %s1237, 8
        %s1239 = scalar_lea.vmem %s5, %s1238
      $region52: #{tpu_custom_call.1} parent=47 // pred_fallthru
        _
    $region48: #{tpu_custom_call.1} parent=5 // pred_fallthru
      _
  $region6: #{tpu_custom_call.1} parent=0 // loop_footer
    %s15 = sadd.s32 1, %s11
  $region7: #{tpu_custom_call.1} parent=0 // loop_footer_branch
    %10 = sbr.rel target = $region3
  $region8: #{tpu_custom_call.1} parent=0 // loop_exit
    _

</llo_original>
